<compile_context>
chip_gen: v5e
topology: v5e:2x2
jax: 0.10.0
libtpu: 0.0.40
codegen_flags: <defaults>
</compile_context>

<pallas_src>
import math

import jax
import jax.numpy as jnp
from jax.experimental import pallas as pl
from jax.experimental.pallas import tpu as pltpu

_MIB = 1024 * 1024


def _round_up(x, m):
    return ((x + m - 1) // m) * m


def _choose_tiles(n):
    """Return (padded N, row tile TM, reduction tile TK) for the adjacency matmul."""
    if n <= 256:
        npad = _round_up(max(n, 8), 16)      # one full-dim tile, bf16-friendly row count
        return npad, npad, npad
    npad = _round_up(n, 128)                 # pad so lane-aligned tiles always divide N

    def pick(target):
        t = min((target // 128) * 128, npad)
        while npad % t:
            t -= 128
        return t

    return npad, pick(512), pick(512)


def _agg_vmem_bytes(tm, tk, f2, emit_bf16):
    n = 2 * tm * tk * 2          # adjacency tiles (bf16, double-buffered)
    n += 2 * tk * f2 * 2         # projected-sequence tiles (bf16)
    n += 2 * 2 * f2 * 4          # [bias; alpha] rows (f32)
    n += 2 * tm * f2 * 4         # f32 output tiles
    if emit_bf16:
        n += 2 * tm * f2 * 2     # bf16 output tiles (feeds the next layer)
    n += tm * f2 * 4             # f32 accumulator scratch
    return n


def _vmem_limit(nbytes):
    return int(min(60 * _MIB, max(32 * _MIB, nbytes * 3 // 2 + 2 * _MIB)))


# ---------------------------------------------------------------------------
# Kernel 1: per-branch projection  X' = [seq_pos @ W | seq_neg @ W]  (bf16 out)
# ---------------------------------------------------------------------------
def _project_kernel(seq_ref, w_ref, out_ref):
    fi = w_ref.shape[0]
    w = w_ref[...]
    op = jnp.dot(seq_ref[:, :fi], w, preferred_element_type=jnp.float32)
    on = jnp.dot(seq_ref[:, fi:], w, preferred_element_type=jnp.float32)
    out_ref[...] = jnp.concatenate([op, on], axis=-1).astype(out_ref.dtype)


def gcn_project(seq_cat, w_stack, *, tiles, branch_stacked):
    """seq_cat: (B, Np, 2*Fi) [shared] or (G, B, Np, 2*Fi) [per-branch], bf16.
    w_stack: (G, Fi, Fo) bf16.  Returns (G, B, Np, 2*Fo) bf16."""
    G, Fi, Fo = w_stack.shape
    TM = tiles[1]
    if branch_stacked:
        _, B, Np, _ = seq_cat.shape
        seq_spec = pl.BlockSpec((None, None, TM, 2 * Fi), lambda g, b, i: (g, b, i, 0))
    else:
        B, Np, _ = seq_cat.shape
        seq_spec = pl.BlockSpec((None, TM, 2 * Fi), lambda g, b, i: (b, i, 0))

    vmem = 2 * TM * 2 * Fi * 2 + 2 * Fi * Fo * 2 + 2 * TM * 2 * Fo * 2
    return pl.pallas_call(
        _project_kernel,
        out_shape=jax.ShapeDtypeStruct((G, B, Np, 2 * Fo), jnp.bfloat16),
        grid=(G, B, Np // TM),
        in_specs=[seq_spec,
                  pl.BlockSpec((None, Fi, Fo), lambda g, b, i: (g, 0, 0))],
        out_specs=pl.BlockSpec((None, None, TM, 2 * Fo), lambda g, b, i: (g, b, i, 0)),
        compiler_params=pltpu.CompilerParams(
            dimension_semantics=("parallel", "parallel", "parallel"),
            vmem_limit_bytes=_vmem_limit(vmem)),
    )(seq_cat, w_stack)


# ---------------------------------------------------------------------------
# Kernel 2: aggregation  H = PReLU(A @ X' + b)  with a 256-lane RHS per k step
# ---------------------------------------------------------------------------
def _make_agg_kernel(emit_bf16):
    def kernel(adj_ref, x_ref, ba_ref, *out_and_scratch):
        if emit_bf16:
            out_f32_ref, out_bf16_ref, acc_ref = out_and_scratch
        else:
            out_f32_ref, acc_ref = out_and_scratch
            out_bf16_ref = None
        k = pl.program_id(3)

        @pl.when(k == 0)
        def _zero():
            acc_ref[...] = jnp.zeros_like(acc_ref)

        # One dot per k step: pos|neg share the adjacency tile and together fill the MXU.
        acc_ref[...] += jnp.dot(adj_ref[...], x_ref[...],
                                preferred_element_type=jnp.float32)

        @pl.when(k == pl.num_programs(3) - 1)
        def _finalize():
            ba = ba_ref[...]
            bias = ba[0:1, :]
            alpha = ba[1:2, :]
            h = acc_ref[...] + bias
            h = jnp.where(h > 0, h, alpha * h)
            out_f32_ref[...] = h.astype(out_f32_ref.dtype)
            if emit_bf16:
                out_bf16_ref[...] = h.astype(jnp.bfloat16)

    return kernel


def gcn_aggregate(a_stack, x_stack, ba_stack, *, tiles, emit_bf16):
    """a_stack: (G, B, Np, Np) bf16; x_stack: (G, B, Np, 2*Fo) bf16;
    ba_stack: (G, 2, 2*Fo) f32 ([bias; alpha]).  Returns f32 (+ optional bf16 copy)."""
    G, B, Np, _ = a_stack.shape
    F2 = x_stack.shape[-1]
    _, TM, TK = tiles

    # Shrink tiles if the double-buffered footprint would exceed the VMEM budget
    # (only in the 128-aligned large-N path; small graphs use a single full tile).
    if TK % 128 == 0:
        budget = 40 * _MIB
        while _agg_vmem_bytes(TM, TK, F2, emit_bf16) > budget and max(TM, TK) > 128:
            if TM >= TK:
                TM //= 2
            else:
                TK //= 2

    out_f32 = jax.ShapeDtypeStruct((G, B, Np, F2), jnp.float32)
    out_spec = pl.BlockSpec((None, None, TM, F2), lambda g, b, i, k: (g, b, i, 0))
    if emit_bf16:
        out_shape = (out_f32, jax.ShapeDtypeStruct((G, B, Np, F2), jnp.bfloat16))
        out_specs = (out_spec, out_spec)
    else:
        out_shape = out_f32
        out_specs = out_spec

    return pl.pallas_call(
        _make_agg_kernel(emit_bf16),
        out_shape=out_shape,
        grid=(G, B, Np // TM, Np // TK),
        in_specs=[
            pl.BlockSpec((None, None, TM, TK), lambda g, b, i, k: (g, b, i, k)),  # A
            pl.BlockSpec((None, None, TK, F2), lambda g, b, i, k: (g, b, k, 0)),  # X'
            pl.BlockSpec((None, 2, F2), lambda g, b, i, k: (g, 0, 0)),            # [b; alpha]
        ],
        out_specs=out_specs,
        scratch_shapes=[pltpu.VMEM((TM, F2), jnp.float32)],
        compiler_params=pltpu.CompilerParams(
            dimension_semantics=("parallel", "parallel", "parallel", "arbitrary"),
            vmem_limit_bytes=_vmem_limit(_agg_vmem_bytes(TM, TK, F2, emit_bf16))),
    )(a_stack, x_stack, ba_stack)


# ---------------------------------------------------------------------------
# Parameter construction (mirrors the PyTorch init) + packing for the kernels
# ---------------------------------------------------------------------------
def make_gcn_params(key, in_ft, out_ft):
    bound = math.sqrt(6.0 / (in_ft + out_ft))            # torch.nn.init.xavier_uniform_
    w = jax.random.uniform(key, (out_ft, in_ft), jnp.float32, -bound, bound)
    return {"w": w,                                       # nn.Linear weight layout
            "bias": jnp.zeros((out_ft,), jnp.float32),    # GCN bias, filled with 0
            "alpha": jnp.float32(0.25)}                   # nn.PReLU() default slope


def _pack_layer(p_list, in_ft, out_ft):
    """Stack (adj, diff) params, zero-pad features to lane multiples of 128.

    Returns W^T stacked (G, Fi, Fo) bf16 and [bias; alpha] rows (G, 2, 2*Fo) f32 laid out
    to match the feature-concatenated [pos | neg] activations."""
    fi = _round_up(in_ft, 128)
    fo = _round_up(out_ft, 128)
    ws, bas = [], []
    for p in p_list:
        ws.append(jnp.zeros((fi, fo), jnp.float32).at[:in_ft, :out_ft].set(p["w"].T))
        bias_row = (jnp.zeros((2 * fo,), jnp.float32)
                    .at[:out_ft].set(p["bias"])
                    .at[fo:fo + out_ft].set(p["bias"]))
        alpha_row = jnp.full((2 * fo,), p["alpha"], jnp.float32)
        bas.append(jnp.stack([bias_row, alpha_row]))
    return jnp.stack(ws).astype(jnp.bfloat16), jnp.stack(bas)


@jax.jit
def model_forward(params, seq_pos, seq_neg, adj, diff):
    B, N, n_in = seq_pos.shape
    n_h = params["gcn_adj_layer1"]["bias"].shape[0]
    fi = _round_up(n_in, 128)
    fo = _round_up(n_h, 128)
    tiles = _choose_tiles(N)
    Np = tiles[0]

    def pad_seq(x):
        return jnp.pad(x, ((0, 0), (0, Np - N), (0, fi - n_in)))

    # Feature-concatenated [pos | neg] input: one 256-lane RHS for the MXU.
    seq_cat = jnp.concatenate([pad_seq(seq_pos), pad_seq(seq_neg)],
                              axis=-1).astype(jnp.bfloat16)

    def pad_adj(a):
        return jnp.pad(a, ((0, 0), (0, Np - N), (0, Np - N)))

    # Branch-stacked adjacency (adj, diff), bf16 once, reused by both layers.
    # TODO(synk): cache this bf16 stack across training steps when adjacency is static.
    a_stack = jnp.stack([pad_adj(adj), pad_adj(diff)]).astype(jnp.bfloat16)

    w1, ba1 = _pack_layer([params["gcn_adj_layer1"], params["gcn_diff_layer1"]], n_in, n_h)
    w2, ba2 = _pack_layer([params["gcn_adj_layer2"], params["gcn_diff_layer2"]], n_h, n_h)

    # ---- Layer 1 (PyTorch order: project first, then aggregate with A) ----
    x1 = gcn_project(seq_cat, w1, tiles=tiles, branch_stacked=False)
    h1_f32, h1_bf16 = gcn_aggregate(a_stack, x1, ba1, tiles=tiles, emit_bf16=True)

    # ---- Layer 2 (consumes the bf16 copy emitted by layer 1 — no extra cast pass) ----
    x2 = gcn_project(h1_bf16, w2, tiles=tiles, branch_stacked=True)
    h2_f32 = gcn_aggregate(a_stack, x2, ba2, tiles=tiles, emit_bf16=False)

    def unpack(h, g, neg):
        off = fo if neg else 0
        return h[g, :, :N, off:off + n_h]

    return (unpack(h1_f32, 0, False), unpack(h1_f32, 1, False),    # l1 pos (adj, diff)
            unpack(h2_f32, 0, False), unpack(h2_f32, 1, False),    # l2 pos (adj, diff)
            unpack(h1_f32, 0, True), unpack(h1_f32, 1, True),      # l1 neg (adj, diff)
            unpack(h2_f32, 0, True), unpack(h2_f32, 1, True))      # l2 neg (adj, diff)


def _reference_forward(params, seq_pos, seq_neg, adj, diff):
    """Pure-JAX reference mirroring the kernel's bf16-MXU / f32-accumulate precision."""
    def gcn(p, seq, a):
        x = jnp.einsum("bnf,fo->bno", seq.astype(jnp.bfloat16),
                       jnp.transpose(p["w"]).astype(jnp.bfloat16),
                       preferred_element_type=jnp.float32).astype(jnp.bfloat16)
        out = jnp.einsum("bmn,bno->bmo", a.astype(jnp.bfloat16), x,
                         preferred_element_type=jnp.float32)
        out = out + p["bias"]
        return jnp.where(out > 0, out, p["alpha"] * out)

    p_a1, p_d1 = params["gcn_adj_layer1"], params["gcn_diff_layer1"]
    p_a2, p_d2 = params["gcn_adj_layer2"], params["gcn_diff_layer2"]
    h_a1_p = gcn(p_a1, seq_pos, adj)
    h_d1_p = gcn(p_d1, seq_pos, diff)
    h_a1_n = gcn(p_a1, seq_neg, adj)
    h_d1_n = gcn(p_d1, seq_neg, diff)
    h_a2_p = gcn(p_a2, h_a1_p, adj)
    h_d2_p = gcn(p_d2, h_d1_p, diff)
    h_a2_n = gcn(p_a2, h_a1_n, adj)
    h_d2_n = gcn(p_d2, h_d1_n, diff)
    return (h_a1_p, h_d1_p, h_a2_p, h_d2_p, h_a1_n, h_d1_n, h_a2_n, h_d2_n)


if __name__ == "__main__":
    B, N, n_in, n_h = 2, 8, 32, 32

    key = jax.random.PRNGKey(0)
    k_sp, k_sn, k_adj, k_diff, k1, k2, k3, k4 = jax.random.split(key, 8)

    seq_pos = jax.random.normal(k_sp, (B, N, n_in), jnp.float32)
    seq_neg = jax.random.normal(k_sn, (B, N, n_in), jnp.float32)
    adj = jax.random.uniform(k_adj, (B, N, N), jnp.float32)
    diff = jax.random.uniform(k_diff, (B, N, N), jnp.float32)

    params = {
        "gcn_adj_layer1": make_gcn_params(k1, n_in, n_h),
        "gcn_diff_layer1": make_gcn_params(k2, n_in, n_h),
        "gcn_adj_layer2": make_gcn_params(k3, n_h, n_h),
        "gcn_diff_layer2": make_gcn_params(k4, n_h, n_h),
    }

    outs = jax.block_until_ready(model_forward(params, seq_pos, seq_neg, adj, diff))

    assert all(o.shape == (B, N, n_h) for o in outs)
    assert all(bool(jnp.all(jnp.isfinite(o))) for o in outs)

    refs = _reference_forward(params, seq_pos, seq_neg, adj, diff)
    for o, r in zip(outs, refs):
        err = float(jnp.max(jnp.abs(o - r)))
        assert err < 1e-1, err

    print("KERNEL_OK")
</pallas_src>

<mosaic_0001>
module attributes {stable_mosaic.version = 11 : i64} {
  func.func @_project_kernel(%arg0: i32, %arg1: i32, %arg2: i32, %arg3: memref<1x16x256xbf16, #tpu.memory_space<vmem>>, %arg4: memref<1x128x128xbf16, #tpu.memory_space<vmem>>, %arg5: memref<1x1x16x256xbf16, #tpu.memory_space<vmem>>) attributes {dimension_semantics = [#tpu.dimension_semantics<parallel>, #tpu.dimension_semantics<parallel>, #tpu.dimension_semantics<parallel>], iteration_bounds = array<i64: 2, 2, 1>, scalar_prefetch = 0 : i64, scratch_operands = 0 : i64, tpu.core_type = #tpu.core_type<tc>, window_params = [{transform_indices = @transform_0, window_bounds = array<i64: 1, 16, 256>}, {transform_indices = @transform_1, window_bounds = array<i64: 1, 128, 128>}, {transform_indices = @transform_2, window_bounds = array<i64: 1, 1, 16, 256>}]} {
    %c0 = arith.constant 0 : index
    %c0_0 = arith.constant 0 : index
    %c0_1 = arith.constant 0 : index
    %0 = vector.load %arg4[%c0, %c0_0, %c0_1] : memref<1x128x128xbf16, #tpu.memory_space<vmem>>, vector<1x128x128xbf16>
    %1 = vector.shape_cast %0 : vector<1x128x128xbf16> to vector<128x128xbf16>
    %c0_2 = arith.constant 0 : index
    %c0_3 = arith.constant 0 : index
    %c0_4 = arith.constant 0 : index
    %2 = vector.load %arg3[%c0_2, %c0_3, %c0_4] : memref<1x16x256xbf16, #tpu.memory_space<vmem>>, vector<1x16x128xbf16>
    %3 = vector.shape_cast %2 : vector<1x16x128xbf16> to vector<16x128xbf16>
    %cst = arith.constant dense<0.000000e+00> : vector<16x128xf32>
    %4 = tpu.matmul %3, %1, %cst {dimension_numbers = #tpu.dot_dimension_numbers<[1], [0], [0], [1], [0, 0, 1, 1], [], []>} : vector<16x128xbf16>, vector<128x128xbf16>, vector<16x128xf32> -> vector<16x128xf32>
    %c0_5 = arith.constant 0 : index
    %c0_6 = arith.constant 0 : index
    %c128 = arith.constant 128 : index
    %5 = vector.load %arg3[%c0_5, %c0_6, %c128] : memref<1x16x256xbf16, #tpu.memory_space<vmem>>, vector<1x16x128xbf16>
    %6 = vector.shape_cast %5 : vector<1x16x128xbf16> to vector<16x128xbf16>
    %cst_7 = arith.constant dense<0.000000e+00> : vector<16x128xf32>
    %7 = tpu.matmul %6, %1, %cst_7 {dimension_numbers = #tpu.dot_dimension_numbers<[1], [0], [0], [1], [0, 0, 1, 1], [], []>} : vector<16x128xbf16>, vector<128x128xbf16>, vector<16x128xf32> -> vector<16x128xf32>
    %8 = tpu.concatenate %4, %7 in 1 : vector<16x128xf32>, vector<16x128xf32> -> vector<16x256xf32>
    %9 = arith.truncf %8 : vector<16x256xf32> to vector<16x256xbf16>
    %c0_8 = arith.constant 0 : index
    %c0_9 = arith.constant 0 : index
    %c0_10 = arith.constant 0 : index
    %c0_11 = arith.constant 0 : index
    %10 = vector.load %arg5[%c0_8, %c0_9, %c0_10, %c0_11] : memref<1x1x16x256xbf16, #tpu.memory_space<vmem>>, vector<1x1x16x256xbf16>
    %11 = vector.shape_cast %10 : vector<1x1x16x256xbf16> to vector<16x256xbf16>
    %12 = vector.shape_cast %9 : vector<16x256xbf16> to vector<1x1x16x256xbf16>
    tpu.vector_store %arg5[%c0_8, %c0_9, %c0_10, %c0_11], %12 {strides = array<i32>} : memref<1x1x16x256xbf16, #tpu.memory_space<vmem>>, vector<1x1x16x256xbf16>,
    return
  }
  func.func @transform_0(%arg0: i32, %arg1: i32, %arg2: i32) -> (i32, i32, i32) {
    %c0_i32 = arith.constant 0 : i32
    %c0_i32_0 = arith.constant 0 : i32
    return %arg1, %arg2, %c0_i32 : i32, i32, i32
  }
  func.func @transform_1(%arg0: i32, %arg1: i32, %arg2: i32) -> (i32, i32, i32) {
    %c0_i32 = arith.constant 0 : i32
    %c0_i32_0 = arith.constant 0 : i32
    %c0_i32_1 = arith.constant 0 : i32
    return %arg0, %c0_i32, %c0_i32_0 : i32, i32, i32
  }
  func.func @transform_2(%arg0: i32, %arg1: i32, %arg2: i32) -> (i32, i32, i32, i32) {
    %c0_i32 = arith.constant 0 : i32
    %c0_i32_0 = arith.constant 0 : i32
    return %arg0, %arg1, %arg2, %c0_i32 : i32, i32, i32, i32
  }
}

module attributes {stable_mosaic.version = 11 : i64} {
  func.func @kernel(%arg0: i32, %arg1: i32, %arg2: i32, %arg3: i32, %arg4: memref<1x1x16x16xbf16, #tpu.memory_space<vmem>>, %arg5: memref<1x1x16x256xbf16, #tpu.memory_space<vmem>>, %arg6: memref<1x2x256xf32, #tpu.memory_space<vmem>>, %arg7: memref<1x1x16x256xf32, #tpu.memory_space<vmem>>, %arg8: memref<1x1x16x256xbf16, #tpu.memory_space<vmem>>, %arg9: memref<16x256xf32, #tpu.memory_space<vmem>>) attributes {dimension_semantics = [#tpu.dimension_semantics<parallel>, #tpu.dimension_semantics<parallel>, #tpu.dimension_semantics<parallel>, #tpu.dimension_semantics<arbitrary>], iteration_bounds = array<i64: 2, 2, 1, 1>, scalar_prefetch = 0 : i64, scratch_operands = 1 : i64, tpu.core_type = #tpu.core_type<tc>, window_params = [{transform_indices = @transform_0, window_bounds = array<i64: 1, 1, 16, 16>}, {transform_indices = @transform_1, window_bounds = array<i64: 1, 1, 16, 256>}, {transform_indices = @transform_2, window_bounds = array<i64: 1, 2, 256>}, {transform_indices = @transform_3, window_bounds = array<i64: 1, 1, 16, 256>}, {transform_indices = @transform_4, window_bounds = array<i64: 1, 1, 16, 256>}]} {
    %c0_i32 = arith.constant 0 : i32
    %0 = arith.cmpi eq, %arg3, %c0_i32 : i32
    %1 = arith.extui %0 : i1 to i32
    %c0_i32_0 = arith.constant 0 : i32
    %2 = arith.cmpi ne, %1, %c0_i32_0 : i32
    scf.if %2 {
      %cst_14 = arith.constant 0.000000e+00 : f32
      %14 = vector.broadcast %cst_14 : f32 to vector<16x256xf32>
      %c0_15 = arith.constant 0 : index
      %c0_16 = arith.constant 0 : index
      %15 = vector.load %arg9[%c0_15, %c0_16] : memref<16x256xf32, #tpu.memory_space<vmem>>, vector<16x256xf32>
      tpu.vector_store %arg9[%c0_15, %c0_16], %14 {strides = array<i32>} : memref<16x256xf32, #tpu.memory_space<vmem>>, vector<16x256xf32>,
    } else {
    }
    %c0 = arith.constant 0 : index
    %c0_1 = arith.constant 0 : index
    %3 = vector.load %arg9[%c0, %c0_1] : memref<16x256xf32, #tpu.memory_space<vmem>>, vector<16x256xf32>
    %c0_2 = arith.constant 0 : index
    %c0_3 = arith.constant 0 : index
    %c0_4 = arith.constant 0 : index
    %c0_5 = arith.constant 0 : index
    %4 = vector.load %arg4[%c0_2, %c0_3, %c0_4, %c0_5] : memref<1x1x16x16xbf16, #tpu.memory_space<vmem>>, vector<1x1x16x16xbf16>
    %5 = vector.shape_cast %4 : vector<1x1x16x16xbf16> to vector<16x16xbf16>
    %c0_6 = arith.constant 0 : index
    %c0_7 = arith.constant 0 : index
    %c0_8 = arith.constant 0 : index
    %c0_9 = arith.constant 0 : index
    %6 = vector.load %arg5[%c0_6, %c0_7, %c0_8, %c0_9] : memref<1x1x16x256xbf16, #tpu.memory_space<vmem>>, vector<1x1x16x256xbf16>
    %7 = vector.shape_cast %6 : vector<1x1x16x256xbf16> to vector<16x256xbf16>
    %cst = arith.constant dense<0.000000e+00> : vector<16x256xf32>
    %8 = tpu.matmul %5, %7, %cst {dimension_numbers = #tpu.dot_dimension_numbers<[1], [0], [0], [1], [0, 0, 1, 1], [], []>} : vector<16x16xbf16>, vector<16x256xbf16>, vector<16x256xf32> -> vector<16x256xf32>
    %9 = arith.addf %3, %8 : vector<16x256xf32>
    %c0_10 = arith.constant 0 : index
    %c0_11 = arith.constant 0 : index
    %10 = vector.load %arg9[%c0_10, %c0_11] : memref<16x256xf32, #tpu.memory_space<vmem>>, vector<16x256xf32>
    tpu.vector_store %arg9[%c0_10, %c0_11], %9 {strides = array<i32>} : memref<16x256xf32, #tpu.memory_space<vmem>>, vector<16x256xf32>,
    %c0_i32_12 = arith.constant 0 : i32
    %11 = arith.cmpi eq, %arg3, %c0_i32_12 : i32
    %12 = arith.extui %11 : i1 to i32
    %c0_i32_13 = arith.constant 0 : i32
    %13 = arith.cmpi ne, %12, %c0_i32_13 : i32
    scf.if %13 {
      %c0_14 = arith.constant 0 : index
      %c0_15 = arith.constant 0 : index
      %c0_16 = arith.constant 0 : index
      %14 = vector.load %arg6[%c0_14, %c0_15, %c0_16] : memref<1x2x256xf32, #tpu.memory_space<vmem>>, vector<1x2x256xf32>
      %15 = vector.shape_cast %14 : vector<1x2x256xf32> to vector<2x256xf32>
      %16 = vector.extract_strided_slice %15 {offsets = [0, 0], sizes = [1, 256], strides = [1, 1]} : vector<2x256xf32> to vector<1x256xf32>
      %17 = vector.extract_strided_slice %15 {offsets = [1, 0], sizes = [1, 256], strides = [1, 1]} : vector<2x256xf32> to vector<1x256xf32>
      %c0_17 = arith.constant 0 : index
      %c0_18 = arith.constant 0 : index
      %18 = vector.load %arg9[%c0_17, %c0_18] : memref<16x256xf32, #tpu.memory_space<vmem>>, vector<16x256xf32>
      %19 = vector.broadcast %16 : vector<1x256xf32> to vector<16x256xf32>
      %20 = arith.addf %18, %19 : vector<16x256xf32>
      %cst_19 = arith.constant 0.000000e+00 : f32
      %21 = vector.broadcast %cst_19 : f32 to vector<16x256xf32>
      %22 = arith.cmpf ogt, %20, %21 : vector<16x256xf32>
      %23 = vector.broadcast %17 : vector<1x256xf32> to vector<16x256xf32>
      %24 = arith.mulf %23, %20 : vector<16x256xf32>
      %25 = arith.select %22, %20, %24 : vector<16x256xi1>, vector<16x256xf32>
      %c0_20 = arith.constant 0 : index
      %c0_21 = arith.constant 0 : index
      %c0_22 = arith.constant 0 : index
      %c0_23 = arith.constant 0 : index
      %26 = vector.load %arg7[%c0_20, %c0_21, %c0_22, %c0_23] : memref<1x1x16x256xf32, #tpu.memory_space<vmem>>, vector<1x1x16x256xf32>
      %27 = vector.shape_cast %26 : vector<1x1x16x256xf32> to vector<16x256xf32>
      %28 = vector.shape_cast %25 : vector<16x256xf32> to vector<1x1x16x256xf32>
      tpu.vector_store %arg7[%c0_20, %c0_21, %c0_22, %c0_23], %28 {strides = array<i32>} : memref<1x1x16x256xf32, #tpu.memory_space<vmem>>, vector<1x1x16x256xf32>,
      %29 = arith.truncf %25 : vector<16x256xf32> to vector<16x256xbf16>
      %c0_24 = arith.constant 0 : index
      %c0_25 = arith.constant 0 : index
      %c0_26 = arith.constant 0 : index
      %c0_27 = arith.constant 0 : index
      %30 = vector.load %arg8[%c0_24, %c0_25, %c0_26, %c0_27] : memref<1x1x16x256xbf16, #tpu.memory_space<vmem>>, vector<1x1x16x256xbf16>
      %31 = vector.shape_cast %30 : vector<1x1x16x256xbf16> to vector<16x256xbf16>
      %32 = vector.shape_cast %29 : vector<16x256xbf16> to vector<1x1x16x256xbf16>
      tpu.vector_store %arg8[%c0_24, %c0_25, %c0_26, %c0_27], %32 {strides = array<i32>} : memref<1x1x16x256xbf16, #tpu.memory_space<vmem>>, vector<1x1x16x256xbf16>,
    } else {
    }
    return
  }
  func.func @transform_0(%arg0: i32, %arg1: i32, %arg2: i32, %arg3: i32) -> (i32, i32, i32, i32) {
    %c0_i32 = arith.constant 0 : i32
    return %arg0, %arg1, %arg2, %arg3 : i32, i32, i32, i32
  }
  func.func @transform_1(%arg0: i32, %arg1: i32, %arg2: i32, %arg3: i32) -> (i32, i32, i32, i32) {
    %c0_i32 = arith.constant 0 : i32
    %c0_i32_0 = arith.constant 0 : i32
    return %arg0, %arg1, %arg3, %c0_i32 : i32, i32, i32, i32
  }
  func.func @transform_2(%arg0: i32, %arg1: i32, %arg2: i32, %arg3: i32) -> (i32, i32, i32) {
    %c0_i32 = arith.constant 0 : i32
    %c0_i32_0 = arith.constant 0 : i32
    %c0_i32_1 = arith.constant 0 : i32
    return %arg0, %c0_i32, %c0_i32_0 : i32, i32, i32
  }
  func.func @transform_3(%arg0: i32, %arg1: i32, %arg2: i32, %arg3: i32) -> (i32, i32, i32, i32) {
    %c0_i32 = arith.constant 0 : i32
    %c0_i32_0 = arith.constant 0 : i32
    return %arg0, %arg1, %arg2, %c0_i32 : i32, i32, i32, i32
  }
  func.func @transform_4(%arg0: i32, %arg1: i32, %arg2: i32, %arg3: i32) -> (i32, i32, i32, i32) {
    %c0_i32 = arith.constant 0 : i32
    %c0_i32_0 = arith.constant 0 : i32
    return %arg0, %arg1, %arg2, %c0_i32 : i32, i32, i32, i32
  }
}

module attributes {stable_mosaic.version = 11 : i64} {
  func.func @_project_kernel(%arg0: i32, %arg1: i32, %arg2: i32, %arg3: memref<1x1x16x256xbf16, #tpu.memory_space<vmem>>, %arg4: memref<1x128x128xbf16, #tpu.memory_space<vmem>>, %arg5: memref<1x1x16x256xbf16, #tpu.memory_space<vmem>>) attributes {dimension_semantics = [#tpu.dimension_semantics<parallel>, #tpu.dimension_semantics<parallel>, #tpu.dimension_semantics<parallel>], iteration_bounds = array<i64: 2, 2, 1>, scalar_prefetch = 0 : i64, scratch_operands = 0 : i64, tpu.core_type = #tpu.core_type<tc>, window_params = [{transform_indices = @transform_0, window_bounds = array<i64: 1, 1, 16, 256>}, {transform_indices = @transform_1, window_bounds = array<i64: 1, 128, 128>}, {transform_indices = @transform_2, window_bounds = array<i64: 1, 1, 16, 256>}]} {
    %c0 = arith.constant 0 : index
    %c0_0 = arith.constant 0 : index
    %c0_1 = arith.constant 0 : index
    %0 = vector.load %arg4[%c0, %c0_0, %c0_1] : memref<1x128x128xbf16, #tpu.memory_space<vmem>>, vector<1x128x128xbf16>
    %1 = vector.shape_cast %0 : vector<1x128x128xbf16> to vector<128x128xbf16>
    %c0_2 = arith.constant 0 : index
    %c0_3 = arith.constant 0 : index
    %c0_4 = arith.constant 0 : index
    %c0_5 = arith.constant 0 : index
    %2 = vector.load %arg3[%c0_2, %c0_3, %c0_4, %c0_5] : memref<1x1x16x256xbf16, #tpu.memory_space<vmem>>, vector<1x1x16x128xbf16>
    %3 = vector.shape_cast %2 : vector<1x1x16x128xbf16> to vector<16x128xbf16>
    %cst = arith.constant dense<0.000000e+00> : vector<16x128xf32>
    %4 = tpu.matmul %3, %1, %cst {dimension_numbers = #tpu.dot_dimension_numbers<[1], [0], [0], [1], [0, 0, 1, 1], [], []>} : vector<16x128xbf16>, vector<128x128xbf16>, vector<16x128xf32> -> vector<16x128xf32>
    %c0_6 = arith.constant 0 : index
    %c0_7 = arith.constant 0 : index
    %c0_8 = arith.constant 0 : index
    %c128 = arith.constant 128 : index
    %5 = vector.load %arg3[%c0_6, %c0_7, %c0_8, %c128] : memref<1x1x16x256xbf16, #tpu.memory_space<vmem>>, vector<1x1x16x128xbf16>
    %6 = vector.shape_cast %5 : vector<1x1x16x128xbf16> to vector<16x128xbf16>
    %cst_9 = arith.constant dense<0.000000e+00> : vector<16x128xf32>
    %7 = tpu.matmul %6, %1, %cst_9 {dimension_numbers = #tpu.dot_dimension_numbers<[1], [0], [0], [1], [0, 0, 1, 1], [], []>} : vector<16x128xbf16>, vector<128x128xbf16>, vector<16x128xf32> -> vector<16x128xf32>
    %8 = tpu.concatenate %4, %7 in 1 : vector<16x128xf32>, vector<16x128xf32> -> vector<16x256xf32>
    %9 = arith.truncf %8 : vector<16x256xf32> to vector<16x256xbf16>
    %c0_10 = arith.constant 0 : index
    %c0_11 = arith.constant 0 : index
    %c0_12 = arith.constant 0 : index
    %c0_13 = arith.constant 0 : index
    %10 = vector.load %arg5[%c0_10, %c0_11, %c0_12, %c0_13] : memref<1x1x16x256xbf16, #tpu.memory_space<vmem>>, vector<1x1x16x256xbf16>
    %11 = vector.shape_cast %10 : vector<1x1x16x256xbf16> to vector<16x256xbf16>
    %12 = vector.shape_cast %9 : vector<16x256xbf16> to vector<1x1x16x256xbf16>
    tpu.vector_store %arg5[%c0_10, %c0_11, %c0_12, %c0_13], %12 {strides = array<i32>} : memref<1x1x16x256xbf16, #tpu.memory_space<vmem>>, vector<1x1x16x256xbf16>,
    return
  }
  func.func @transform_0(%arg0: i32, %arg1: i32, %arg2: i32) -> (i32, i32, i32, i32) {
    %c0_i32 = arith.constant 0 : i32
    %c0_i32_0 = arith.constant 0 : i32
    return %arg0, %arg1, %arg2, %c0_i32 : i32, i32, i32, i32
  }
  func.func @transform_1(%arg0: i32, %arg1: i32, %arg2: i32) -> (i32, i32, i32) {
    %c0_i32 = arith.constant 0 : i32
    %c0_i32_0 = arith.constant 0 : i32
    %c0_i32_1 = arith.constant 0 : i32
    return %arg0, %c0_i32, %c0_i32_0 : i32, i32, i32
  }
  func.func @transform_2(%arg0: i32, %arg1: i32, %arg2: i32) -> (i32, i32, i32, i32) {
    %c0_i32 = arith.constant 0 : i32
    %c0_i32_0 = arith.constant 0 : i32
    return %arg0, %arg1, %arg2, %c0_i32 : i32, i32, i32, i32
  }
}

module attributes {stable_mosaic.version = 11 : i64} {
  func.func @kernel(%arg0: i32, %arg1: i32, %arg2: i32, %arg3: i32, %arg4: memref<1x1x16x16xbf16, #tpu.memory_space<vmem>>, %arg5: memref<1x1x16x256xbf16, #tpu.memory_space<vmem>>, %arg6: memref<1x2x256xf32, #tpu.memory_space<vmem>>, %arg7: memref<1x1x16x256xf32, #tpu.memory_space<vmem>>, %arg8: memref<16x256xf32, #tpu.memory_space<vmem>>) attributes {dimension_semantics = [#tpu.dimension_semantics<parallel>, #tpu.dimension_semantics<parallel>, #tpu.dimension_semantics<parallel>, #tpu.dimension_semantics<arbitrary>], iteration_bounds = array<i64: 2, 2, 1, 1>, scalar_prefetch = 0 : i64, scratch_operands = 1 : i64, tpu.core_type = #tpu.core_type<tc>, window_params = [{transform_indices = @transform_0, window_bounds = array<i64: 1, 1, 16, 16>}, {transform_indices = @transform_1, window_bounds = array<i64: 1, 1, 16, 256>}, {transform_indices = @transform_2, window_bounds = array<i64: 1, 2, 256>}, {transform_indices = @transform_3, window_bounds = array<i64: 1, 1, 16, 256>}]} {
    %c0_i32 = arith.constant 0 : i32
    %0 = arith.cmpi eq, %arg3, %c0_i32 : i32
    %1 = arith.extui %0 : i1 to i32
    %c0_i32_0 = arith.constant 0 : i32
    %2 = arith.cmpi ne, %1, %c0_i32_0 : i32
    scf.if %2 {
      %cst_14 = arith.constant 0.000000e+00 : f32
      %14 = vector.broadcast %cst_14 : f32 to vector<16x256xf32>
      %c0_15 = arith.constant 0 : index
      %c0_16 = arith.constant 0 : index
      %15 = vector.load %arg8[%c0_15, %c0_16] : memref<16x256xf32, #tpu.memory_space<vmem>>, vector<16x256xf32>
      tpu.vector_store %arg8[%c0_15, %c0_16], %14 {strides = array<i32>} : memref<16x256xf32, #tpu.memory_space<vmem>>, vector<16x256xf32>,
    } else {
    }
    %c0 = arith.constant 0 : index
    %c0_1 = arith.constant 0 : index
    %3 = vector.load %arg8[%c0, %c0_1] : memref<16x256xf32, #tpu.memory_space<vmem>>, vector<16x256xf32>
    %c0_2 = arith.constant 0 : index
    %c0_3 = arith.constant 0 : index
    %c0_4 = arith.constant 0 : index
    %c0_5 = arith.constant 0 : index
    %4 = vector.load %arg4[%c0_2, %c0_3, %c0_4, %c0_5] : memref<1x1x16x16xbf16, #tpu.memory_space<vmem>>, vector<1x1x16x16xbf16>
    %5 = vector.shape_cast %4 : vector<1x1x16x16xbf16> to vector<16x16xbf16>
    %c0_6 = arith.constant 0 : index
    %c0_7 = arith.constant 0 : index
    %c0_8 = arith.constant 0 : index
    %c0_9 = arith.constant 0 : index
    %6 = vector.load %arg5[%c0_6, %c0_7, %c0_8, %c0_9] : memref<1x1x16x256xbf16, #tpu.memory_space<vmem>>, vector<1x1x16x256xbf16>
    %7 = vector.shape_cast %6 : vector<1x1x16x256xbf16> to vector<16x256xbf16>
    %cst = arith.constant dense<0.000000e+00> : vector<16x256xf32>
    %8 = tpu.matmul %5, %7, %cst {dimension_numbers = #tpu.dot_dimension_numbers<[1], [0], [0], [1], [0, 0, 1, 1], [], []>} : vector<16x16xbf16>, vector<16x256xbf16>, vector<16x256xf32> -> vector<16x256xf32>
    %9 = arith.addf %3, %8 : vector<16x256xf32>
    %c0_10 = arith.constant 0 : index
    %c0_11 = arith.constant 0 : index
    %10 = vector.load %arg8[%c0_10, %c0_11] : memref<16x256xf32, #tpu.memory_space<vmem>>, vector<16x256xf32>
    tpu.vector_store %arg8[%c0_10, %c0_11], %9 {strides = array<i32>} : memref<16x256xf32, #tpu.memory_space<vmem>>, vector<16x256xf32>,
    %c0_i32_12 = arith.constant 0 : i32
    %11 = arith.cmpi eq, %arg3, %c0_i32_12 : i32
    %12 = arith.extui %11 : i1 to i32
    %c0_i32_13 = arith.constant 0 : i32
    %13 = arith.cmpi ne, %12, %c0_i32_13 : i32
    scf.if %13 {
      %c0_14 = arith.constant 0 : index
      %c0_15 = arith.constant 0 : index
      %c0_16 = arith.constant 0 : index
      %14 = vector.load %arg6[%c0_14, %c0_15, %c0_16] : memref<1x2x256xf32, #tpu.memory_space<vmem>>, vector<1x2x256xf32>
      %15 = vector.shape_cast %14 : vector<1x2x256xf32> to vector<2x256xf32>
      %16 = vector.extract_strided_slice %15 {offsets = [0, 0], sizes = [1, 256], strides = [1, 1]} : vector<2x256xf32> to vector<1x256xf32>
      %17 = vector.extract_strided_slice %15 {offsets = [1, 0], sizes = [1, 256], strides = [1, 1]} : vector<2x256xf32> to vector<1x256xf32>
      %c0_17 = arith.constant 0 : index
      %c0_18 = arith.constant 0 : index
      %18 = vector.load %arg8[%c0_17, %c0_18] : memref<16x256xf32, #tpu.memory_space<vmem>>, vector<16x256xf32>
      %19 = vector.broadcast %16 : vector<1x256xf32> to vector<16x256xf32>
      %20 = arith.addf %18, %19 : vector<16x256xf32>
      %cst_19 = arith.constant 0.000000e+00 : f32
      %21 = vector.broadcast %cst_19 : f32 to vector<16x256xf32>
      %22 = arith.cmpf ogt, %20, %21 : vector<16x256xf32>
      %23 = vector.broadcast %17 : vector<1x256xf32> to vector<16x256xf32>
      %24 = arith.mulf %23, %20 : vector<16x256xf32>
      %25 = arith.select %22, %20, %24 : vector<16x256xi1>, vector<16x256xf32>
      %c0_20 = arith.constant 0 : index
      %c0_21 = arith.constant 0 : index
      %c0_22 = arith.constant 0 : index
      %c0_23 = arith.constant 0 : index
      %26 = vector.load %arg7[%c0_20, %c0_21, %c0_22, %c0_23] : memref<1x1x16x256xf32, #tpu.memory_space<vmem>>, vector<1x1x16x256xf32>
      %27 = vector.shape_cast %26 : vector<1x1x16x256xf32> to vector<16x256xf32>
      %28 = vector.shape_cast %25 : vector<16x256xf32> to vector<1x1x16x256xf32>
      tpu.vector_store %arg7[%c0_20, %c0_21, %c0_22, %c0_23], %28 {strides = array<i32>} : memref<1x1x16x256xf32, #tpu.memory_space<vmem>>, vector<1x1x16x256xf32>,
    } else {
    }
    return
  }
  func.func @transform_0(%arg0: i32, %arg1: i32, %arg2: i32, %arg3: i32) -> (i32, i32, i32, i32) {
    %c0_i32 = arith.constant 0 : i32
    return %arg0, %arg1, %arg2, %arg3 : i32, i32, i32, i32
  }
  func.func @transform_1(%arg0: i32, %arg1: i32, %arg2: i32, %arg3: i32) -> (i32, i32, i32, i32) {
    %c0_i32 = arith.constant 0 : i32
    %c0_i32_0 = arith.constant 0 : i32
    return %arg0, %arg1, %arg3, %c0_i32 : i32, i32, i32, i32
  }
  func.func @transform_2(%arg0: i32, %arg1: i32, %arg2: i32, %arg3: i32) -> (i32, i32, i32) {
    %c0_i32 = arith.constant 0 : i32
    %c0_i32_0 = arith.constant 0 : i32
    %c0_i32_1 = arith.constant 0 : i32
    return %arg0, %c0_i32, %c0_i32_0 : i32, i32, i32
  }
  func.func @transform_3(%arg0: i32, %arg1: i32, %arg2: i32, %arg3: i32) -> (i32, i32, i32, i32) {
    %c0_i32 = arith.constant 0 : i32
    %c0_i32_0 = arith.constant 0 : i32
    return %arg0, %arg1, %arg2, %c0_i32 : i32, i32, i32, i32
  }
}

</mosaic_0001>

<llo_original>
// kernel: model_forward.5
$region0: #{model_forward.5}
  #allocation0 [shape = 'u32[]', space=smem, size = 0x4, offset = 0x4, fixed_abs, tag = 'smem constant byte address 0x4 - core index']
  #allocation1 [shape = 'u32[72,128]{1,0:T(1,128)}', space=vmem, size = 0x9000, scoped, tag = 'internal scratch']
  #allocation2 [shape = 'f32[16,256]{1,0:T(8,128)}', space=vmem, size = 0x4000, scoped, tag = 'scratch operand']
  %s0 = inlined_call_operand.vmem [shape: bf16[2,2,16,16], index: 0, kind: input, shape index: {}]
  %s1 = inlined_call_operand.vmem [shape: bf16[2,2,16,256], index: 1, kind: input, shape index: {}]
  %s2 = inlined_call_operand.vmem [shape: f32[2,2,256], index: 2, kind: input, shape index: {}]
  %s3 = inlined_call_operand.vmem [shape: f32[2,2,16,256], index: 3, kind: output, shape index: {0}]
  %s4 = inlined_call_operand.vmem [shape: bf16[2,2,16,256], index: 4, kind: output, shape index: {1}]
  %5 = xla_tuple %s3, %s4
  %s6 = sld [smem:[#allocation0]]
  $region61: #{model_forward.5} parent=0
    _
  %s8 = ssub.s32 1, %s6
  %s9 = scalar_select 0, %s8, %s6
  loop: start=0, step=1, limit=6
  $region2: #{model_forward.5} parent=0 // loop_pre_header
    _
  $region3: #{model_forward.5} parent=0 // loop_header
    %s11 = sphi 0, %s15
    %p12 = scmp.ge.s32.totalorder %s11, 6
    %s18 = sphi 0, %s44
    %s19 = sphi 0, %s40
    %s20 = sphi 0, %s36
    %s21 = sphi 0, %s32
    %s22 = sphi 0, %s18
    %s23 = sphi 0, %s19
    %s24 = sphi 0, %s20
    %s25 = sphi 0, %s21
    %s26 = sphi 0, %s22
    %s27 = sphi 0, %s23
    %s28 = sphi 0, %s24
    %s29 = sphi 0, %s25
    %s53 = sphi 0, %s55
    %s56 = sphi 0, %s53
    %s57 = sphi 0, %s56
    %s73 = sphi 0, %s57
    %s83 = sphi 0, %s85
    %s86 = sphi 0, %s83
    %s87 = sphi 0, %s86
    %s103 = sphi 0, %s87
    %s109 = sphi 0, %s111
    %s112 = sphi 0, %s109
    %s113 = sphi 0, %s112
    %s129 = sphi 0, %s113
    %s139 = sphi 0, %s141
    %s142 = sphi 0, %s139
    %s143 = sphi 0, %s142
    %s159 = sphi 0, %s143
    %s169 = sphi 0, %s171
    %s172 = sphi 0, %s169
    %s173 = sphi 0, %s172
    %s189 = sphi 0, %s173
  $region4: #{model_forward.5} parent=0 // loop_header_branch
    %14 = sbr.rel (%p12) target = $region8
  $region5: #{model_forward.5} parent=0 // loop_body
    %s16 = ssub.s32 %s11, 1
    %s17 = ssub.s32 %s11, 2
    %s30 = sadd.s32 1, %s21
    %p31 = scmp.ge.s32.totalorder %s30, 1
    %s32 = scalar_select %p31, 0, %s30
    %s33 = sadd.s32 1, %s20
    %s34 = scalar_select %p31, %s33, %s20
    %p35 = scmp.ge.s32.totalorder %s34, 1
    %s36 = scalar_select %p35, 0, %s34
    %s37 = sadd.s32 1, %s19
    %s38 = scalar_select %p35, %s37, %s19
    %p39 = scmp.ge.s32.totalorder %s38, 2
    %s40 = scalar_select %p39, 0, %s38
    %s41 = sadd.s32 1, %s18
    %s42 = scalar_select %p39, %s41, %s18
    %p43 = scmp.ge.s32.totalorder %s42, 2
    %s44 = scalar_select %p43, 0, %s42
    %s45 = ssub.s32 %s18, %s44
    %s46 = ssub.s32 %s19, %s40
    %s47 = sor.u32 %s45, %s46
    %s48 = ssub.s32 %s20, %s36
    %s49 = sor.u32 %s47, %s48
    %s50 = ssub.s32 %s21, %s32
    %s51 = sor.u32 %s49, %s50
    %p52 = scmp.eq.s32.totalorder %s51, 0
    %s54 = sadd.s32 %s53, 1
    %s55 = scalar_select %p52, %s53, %s54
    %p58 = pneg %p52
    %p59 = scmp.eq.s32.totalorder %s11, 3
    %p60 = por %p58, %p59
    %p61 = scmp.ne.s32.totalorder %s53, %s56
    %p62 = scmp.eq.s32.totalorder %s11, 0
    %p63 = por %p61, %p62
    %p64 = scmp.ne.s32.totalorder %s53, %s56
    %p65 = scmp.eq.s32.totalorder %s16, 3
    %p66 = por %p64, %p65
    %p67 = scmp.ne.s32.totalorder %s56, %s57
    %p68 = scmp.eq.s32.totalorder %s16, 0
    %p69 = por %p67, %p68
    %p70 = scmp.ne.s32.totalorder %s56, %s57
    %p71 = scmp.eq.s32.totalorder %s17, 3
    %p72 = por %p70, %p71
    %p74 = scmp.ne.s32.totalorder %s57, %s73
    %p75 = scmp.eq.s32.totalorder %s17, 0
    %p76 = por %p74, %p75
    %s77 = ssub.s32 %s18, %s44
    %s78 = ssub.s32 %s19, %s40
    %s79 = sor.u32 %s77, %s78
    %s80 = ssub.s32 %s21, %s32
    %s81 = sor.u32 %s79, %s80
    %p82 = scmp.eq.s32.totalorder %s81, 0
    %s84 = sadd.s32 %s83, 1
    %s85 = scalar_select %p82, %s83, %s84
    %p88 = pneg %p82
    %p89 = scmp.eq.s32.totalorder %s11, 3
    %p90 = por %p88, %p89
    %p91 = scmp.ne.s32.totalorder %s83, %s86
    %p92 = scmp.eq.s32.totalorder %s11, 0
    %p93 = por %p91, %p92
    %p94 = scmp.ne.s32.totalorder %s83, %s86
    %p95 = scmp.eq.s32.totalorder %s16, 3
    %p96 = por %p94, %p95
    %p97 = scmp.ne.s32.totalorder %s86, %s87
    %p98 = scmp.eq.s32.totalorder %s16, 0
    %p99 = por %p97, %p98
    %p100 = scmp.ne.s32.totalorder %s86, %s87
    %p101 = scmp.eq.s32.totalorder %s17, 3
    %p102 = por %p100, %p101
    %p104 = scmp.ne.s32.totalorder %s87, %s103
    %p105 = scmp.eq.s32.totalorder %s17, 0
    %p106 = por %p104, %p105
    %s107 = ssub.s32 %s18, %s44
    %p108 = scmp.eq.s32.totalorder %s107, 0
    %s110 = sadd.s32 %s109, 1
    %s111 = scalar_select %p108, %s109, %s110
    %p114 = pneg %p108
    %p115 = scmp.eq.s32.totalorder %s11, 3
    %p116 = por %p114, %p115
    %p117 = scmp.ne.s32.totalorder %s109, %s112
    %p118 = scmp.eq.s32.totalorder %s11, 0
    %p119 = por %p117, %p118
    %p120 = scmp.ne.s32.totalorder %s109, %s112
    %p121 = scmp.eq.s32.totalorder %s16, 3
    %p122 = por %p120, %p121
    %p123 = scmp.ne.s32.totalorder %s112, %s113
    %p124 = scmp.eq.s32.totalorder %s16, 0
    %p125 = por %p123, %p124
    %p126 = scmp.ne.s32.totalorder %s112, %s113
    %p127 = scmp.eq.s32.totalorder %s17, 3
    %p128 = por %p126, %p127
    %p130 = scmp.ne.s32.totalorder %s113, %s129
    %p131 = scmp.eq.s32.totalorder %s17, 0
    %p132 = por %p130, %p131
    %s133 = ssub.s32 %s18, %s44
    %s134 = ssub.s32 %s19, %s40
    %s135 = sor.u32 %s133, %s134
    %s136 = ssub.s32 %s20, %s36
    %s137 = sor.u32 %s135, %s136
    %p138 = scmp.eq.s32.totalorder %s137, 0
    %s140 = sadd.s32 %s139, 1
    %s141 = scalar_select %p138, %s139, %s140
    %p144 = pneg %p138
    %p145 = scmp.eq.s32.totalorder %s11, 3
    %p146 = por %p144, %p145
    %p147 = scmp.ne.s32.totalorder %s139, %s142
    %p148 = scmp.eq.s32.totalorder %s11, 0
    %p149 = por %p147, %p148
    %p150 = scmp.ne.s32.totalorder %s139, %s142
    %p151 = scmp.eq.s32.totalorder %s16, 3
    %p152 = por %p150, %p151
    %p153 = scmp.ne.s32.totalorder %s142, %s143
    %p154 = scmp.eq.s32.totalorder %s16, 0
    %p155 = por %p153, %p154
    %p156 = scmp.ne.s32.totalorder %s142, %s143
    %p157 = scmp.eq.s32.totalorder %s17, 3
    %p158 = por %p156, %p157
    %p160 = scmp.ne.s32.totalorder %s143, %s159
    %p161 = scmp.eq.s32.totalorder %s17, 0
    %p162 = por %p160, %p161
    %s163 = ssub.s32 %s18, %s44
    %s164 = ssub.s32 %s19, %s40
    %s165 = sor.u32 %s163, %s164
    %s166 = ssub.s32 %s20, %s36
    %s167 = sor.u32 %s165, %s166
    %p168 = scmp.eq.s32.totalorder %s167, 0
    %s170 = sadd.s32 %s169, 1
    %s171 = scalar_select %p168, %s169, %s170
    %p174 = pneg %p168
    %p175 = scmp.eq.s32.totalorder %s11, 3
    %p176 = por %p174, %p175
    %p177 = scmp.ne.s32.totalorder %s169, %s172
    %p178 = scmp.eq.s32.totalorder %s11, 0
    %p179 = por %p177, %p178
    %p180 = scmp.ne.s32.totalorder %s169, %s172
    %p181 = scmp.eq.s32.totalorder %s16, 3
    %p182 = por %p180, %p181
    %p183 = scmp.ne.s32.totalorder %s172, %s173
    %p184 = scmp.eq.s32.totalorder %s16, 0
    %p185 = por %p183, %p184
    %p186 = scmp.ne.s32.totalorder %s172, %s173
    %p187 = scmp.eq.s32.totalorder %s17, 3
    %p188 = por %p186, %p187
    %p190 = scmp.ne.s32.totalorder %s173, %s189
    %p191 = scmp.eq.s32.totalorder %s17, 0
    %p192 = por %p190, %p191
    %p193 = scmp.le.s32.totalorder 1, %s11
    %p194 = scmp.lt.s32.totalorder %s11, 5
    %p195 = pnand %p193, %p194
    %p196 = pneg %p195
    // Predicated region
    $region9: #{model_forward.5} parent=5 // pred_check
      _
    $region10: #{model_forward.5} parent=5 // pred_check_branch
      %198 = sbr.rel (%p195) target = $region12
    $region11: #{model_forward.5} parent=5 // pred_region
      %s199 = ssub.s32 %s11, 1
    $region12: #{model_forward.5} parent=5 // pred_fallthru
      _
    %p200 = scmp.lt.s32.totalorder %s11, 4
    // Predicated region
    $region13: #{model_forward.5} parent=5 // pred_check
      %p201 = pneg %p200
    $region14: #{model_forward.5} parent=5 // pred_check_branch
      %203 = sbr.rel (%p201) target = $region16
    $region15: #{model_forward.5} parent=5 // pred_region
      // Predicated region
      $region17: #{model_forward.5} parent=15 // pred_check
        %p204 = pneg %p63
      $region18: #{model_forward.5} parent=15 // pred_check_branch
        %206 = sbr.rel (%p204) target = $region20
      $region19: #{model_forward.5} parent=15 // pred_region
        %s207 = smul.u32 2, %s20
        %p208 = scmp.lt.s32.totalorder %s18, 1
        %s209 = scalar_select %p208, %s18, 1
        %p210 = scmp.lt.s32.totalorder %s19, 1
        %s211 = scalar_select %p210, %s19, 1
        %p212 = scmp.lt.s32.totalorder %s207, 1
        %s213 = scalar_select %p212, %s207, 1
        %p214 = scmp.lt.s32.totalorder %s21, 0
        %s215 = scalar_select %p214, %s21, 0
        %s216 = sadd.s32 %s215, %s213
        %s217 = smul.addr %s211, 2
        %s218 = sadd.s32 %s216, %s217
        %s219 = smul.addr %s209, 4
        %s220 = sadd.s32 %s218, %s219
        %s221 = smul.addr %s220, 4
        %s222 = scalar_lea.vmem %s0, %s221
        %s223 = smul.u32 2, %s20
      $region20: #{model_forward.5} parent=15 // pred_fallthru
        _
      // Predicated region
      $region21: #{model_forward.5} parent=15 // pred_check
        %p224 = pneg %p93
      $region22: #{model_forward.5} parent=15 // pred_check_branch
        %226 = sbr.rel (%p224) target = $region24
      $region23: #{model_forward.5} parent=15 // pred_region
        %s227 = smul.u32 2, %s21
        %p228 = scmp.lt.s32.totalorder %s18, 1
        %s229 = scalar_select %p228, %s18, 1
        %p230 = scmp.lt.s32.totalorder %s19, 1
        %s231 = scalar_select %p230, %s19, 1
        %p232 = scmp.lt.s32.totalorder %s227, 1
        %s233 = scalar_select %p232, %s227, 1
        %s234 = smul.addr %s233, 2
        %s235 = smul.addr %s231, 4
        %s236 = sadd.s32 %s234, %s235
        %s237 = smul.addr %s229, 8
        %s238 = sadd.s32 %s236, %s237
        %s239 = smul.addr %s238, 4
        %s240 = scalar_lea.vmem %s1, %s239
        %s241 = smul.u32 2, %s21
      $region24: #{model_forward.5} parent=15 // pred_fallthru
        _
      // Predicated region
      $region25: #{model_forward.5} parent=15 // pred_check
        %p242 = pneg %p119
      $region26: #{model_forward.5} parent=15 // pred_check_branch
        %244 = sbr.rel (%p242) target = $region28
      $region27: #{model_forward.5} parent=15 // pred_region
        %p245 = scmp.lt.s32.totalorder %s18, 1
        %s246 = scalar_select %p245, %s18, 1
        %s247 = smul.addr %s246, 2
        %s248 = smul.addr %s247, 2
        %s249 = scalar_lea.vmem %s2, %s248
      $region28: #{model_forward.5} parent=15 // pred_fallthru
        _
    $region16: #{model_forward.5} parent=5 // pred_fallthru
      _
    %p250 = scmp.le.s32.totalorder 1, %s11
    %p251 = scmp.lt.s32.totalorder %s11, 5
    %p252 = pnand %p250, %p251
    %p253 = pneg %p252
    // Predicated region
    $region29: #{model_forward.5} parent=5 // pred_check
      _
    $region30: #{model_forward.5} parent=5 // pred_check_branch
      %255 = sbr.rel (%p252) target = $region32
    $region31: #{model_forward.5} parent=5 // pred_region
      %s256 = ssub.s32 %s11, 1
      %s257 = smul.u32 2, %s24
      %p258 = scmp.lt.s32.totalorder %s22, 1
      %s259 = scalar_select %p258, %s22, 1
      %p260 = scmp.lt.s32.totalorder %s23, 1
      %s261 = scalar_select %p260, %s23, 1
      %p262 = scmp.lt.s32.totalorder %s257, 1
      %s263 = scalar_select %p262, %s257, 1
      %p264 = scmp.lt.s32.totalorder %s25, 0
      %s265 = scalar_select %p264, %s25, 0
      %s266 = sadd.s32 %s265, %s263
      %s267 = smul.addr %s261, 2
      %s268 = sadd.s32 %s266, %s267
      %s269 = smul.addr %s259, 4
      %s270 = sadd.s32 %s268, %s269
      %s271 = smul.addr %s270, 4
      %s272 = scalar_lea.vmem %s0, %s271
      %p273 = pneg %p69
      %p274 = pneg %p66
      %s275 = smul.u32 2, %s25
      %p276 = scmp.lt.s32.totalorder %s22, 1
      %s277 = scalar_select %p276, %s22, 1
      %p278 = scmp.lt.s32.totalorder %s23, 1
      %s279 = scalar_select %p278, %s23, 1
      %p280 = scmp.lt.s32.totalorder %s275, 1
      %s281 = scalar_select %p280, %s275, 1
      %s282 = smul.addr %s281, 2
      %s283 = smul.addr %s279, 4
      %s284 = sadd.s32 %s282, %s283
      %s285 = smul.addr %s277, 8
      %s286 = sadd.s32 %s284, %s285
      %s287 = smul.addr %s286, 4
      %s288 = scalar_lea.vmem %s1, %s287
      %p289 = pneg %p99
      %p290 = pneg %p96
      %p291 = scmp.lt.s32.totalorder %s22, 1
      %s292 = scalar_select %p291, %s22, 1
      %s293 = smul.addr %s292, 2
      %s294 = smul.addr %s293, 2
      %s295 = scalar_lea.vmem %s2, %s294
      %p296 = pneg %p125
      %p297 = pneg %p122
      %p298 = pneg %p155
      %p299 = pneg %p152
      %s300 = smul.u32 2, %s24
      %p301 = scmp.lt.s32.totalorder %s22, 1
      %s302 = scalar_select %p301, %s22, 1
      %p303 = scmp.lt.s32.totalorder %s23, 1
      %s304 = scalar_select %p303, %s23, 1
      %p305 = scmp.lt.s32.totalorder %s300, 1
      %s306 = scalar_select %p305, %s300, 1
      %s307 = smul.addr %s306, 2
      %s308 = smul.addr %s304, 4
      %s309 = sadd.s32 %s307, %s308
      %s310 = smul.addr %s302, 8
      %s311 = sadd.s32 %s309, %s310
      %s312 = smul.addr %s311, 8
      %s313 = scalar_lea.vmem %s3, %s312
      %p314 = pneg %p185
      %p315 = pneg %p182
      %s316 = smul.u32 2, %s24
      %p317 = scmp.lt.s32.totalorder %s22, 1
      %s318 = scalar_select %p317, %s22, 1
      %p319 = scmp.lt.s32.totalorder %s23, 1
      %s320 = scalar_select %p319, %s23, 1
      %p321 = scmp.lt.s32.totalorder %s316, 1
      %s322 = scalar_select %p321, %s316, 1
      %s323 = smul.addr %s322, 2
      %s324 = smul.addr %s320, 4
      %s325 = sadd.s32 %s323, %s324
      %s326 = smul.addr %s318, 8
      %s327 = sadd.s32 %s325, %s326
      %s328 = smul.addr %s327, 4
      %s329 = scalar_lea.vmem %s4, %s328
      %s330 = smul.u32 2, %s24
      %p331 = scmp.lt.s32.totalorder %s22, 1
      %s332 = scalar_select %p331, %s22, 1
      %p333 = scmp.lt.s32.totalorder %s23, 1
      %s334 = scalar_select %p333, %s23, 1
      %p335 = scmp.lt.s32.totalorder %s330, 1
      %s336 = scalar_select %p335, %s330, 1
      %p337 = scmp.lt.s32.totalorder %s25, 0
      %s338 = scalar_select %p337, %s25, 0
      %s339 = sadd.s32 %s338, %s336
      %s340 = smul.addr %s334, 2
      %s341 = sadd.s32 %s339, %s340
      %s342 = smul.addr %s332, 4
      %s343 = sadd.s32 %s341, %s342
      %s344 = smul.addr %s343, 4
      %s345 = scalar_lea.vmem %s0, %s344
      %s346 = smul.u32 2, %s24
      %s347 = smul.u32 2, %s25
      %p348 = scmp.lt.s32.totalorder %s22, 1
      %s349 = scalar_select %p348, %s22, 1
      %p350 = scmp.lt.s32.totalorder %s23, 1
      %s351 = scalar_select %p350, %s23, 1
      %p352 = scmp.lt.s32.totalorder %s347, 1
      %s353 = scalar_select %p352, %s347, 1
      %s354 = smul.addr %s353, 2
      %s355 = smul.addr %s351, 4
      %s356 = sadd.s32 %s354, %s355
      %s357 = smul.addr %s349, 8
      %s358 = sadd.s32 %s356, %s357
      %s359 = smul.addr %s358, 4
      %s360 = scalar_lea.vmem %s1, %s359
      %s361 = smul.u32 2, %s25
      %p362 = scmp.lt.s32.totalorder %s22, 1
      %s363 = scalar_select %p362, %s22, 1
      %s364 = smul.addr %s363, 2
      %s365 = smul.addr %s364, 2
      %s366 = scalar_lea.vmem %s2, %s365
      %s367 = smul.u32 2, %s24
      %p368 = scmp.lt.s32.totalorder %s22, 1
      %s369 = scalar_select %p368, %s22, 1
      %p370 = scmp.lt.s32.totalorder %s23, 1
      %s371 = scalar_select %p370, %s23, 1
      %p372 = scmp.lt.s32.totalorder %s367, 1
      %s373 = scalar_select %p372, %s367, 1
      %s374 = smul.addr %s373, 2
      %s375 = smul.addr %s371, 4
      %s376 = sadd.s32 %s374, %s375
      %s377 = smul.addr %s369, 8
      %s378 = sadd.s32 %s376, %s377
      %s379 = smul.addr %s378, 8
      %s380 = scalar_lea.vmem %s3, %s379
      %s381 = smul.u32 2, %s24
      %s382 = smul.u32 2, %s24
      %p383 = scmp.lt.s32.totalorder %s22, 1
      %s384 = scalar_select %p383, %s22, 1
      %p385 = scmp.lt.s32.totalorder %s23, 1
      %s386 = scalar_select %p385, %s23, 1
      %p387 = scmp.lt.s32.totalorder %s382, 1
      %s388 = scalar_select %p387, %s382, 1
      %s389 = smul.addr %s388, 2
      %s390 = smul.addr %s386, 4
      %s391 = sadd.s32 %s389, %s390
      %s392 = smul.addr %s384, 8
      %s393 = sadd.s32 %s391, %s392
      %s394 = smul.addr %s393, 4
      %s395 = scalar_lea.vmem %s4, %s394
      %s396 = smul.u32 2, %s24
      %p398 = scmp.eq.s32.totalorder %s25, 0
      // Predicated region
      $region33: #{model_forward.5} parent=31 // pred_check
        %p399 = pneg %p398
      $region34: #{model_forward.5} parent=31 // pred_check_branch
        %401 = sbr.rel (%p399) target = $region36
      $region35: #{model_forward.5} parent=31 // pred_region
        %402 = vst [vmem:[#allocation2] sm:$0xff] 0.0
        %403 = vst [vmem:[#allocation2 + $0x8] sm:$0xff] 0.0
        %404 = vst [vmem:[#allocation2 + $0x10] sm:$0xff] 0.0
        %405 = vst [vmem:[#allocation2 + $0x18] sm:$0xff] 0.0
      $region36: #{model_forward.5} parent=31 // pred_fallthru
        _
      %v406 = vld [vmem:[#allocation2] sm:$0xff]
      %v407 = vld [vmem:[#allocation2 + $0x8] sm:$0xff]
      %v408 = vld [vmem:[#allocation2 + $0x10] sm:$0xff]
      %v409 = vld [vmem:[#allocation2 + $0x18] sm:$0xff]
      %v410 = vld [vmem:[%s345] sm:$0xf]
      %v411 = vld [vmem:[%s345 + $0x4] sm:$0xf]
      %v412 = vld [vmem:[%s360] sm:$0xff]
      %v413 = vld [vmem:[%s360 + $0x8] sm:$0xff]
      %v416 = vunpack.c.l.b16 %v410
      %v417 = vunpack.c.l.b16 %v411
      %v418 = vpack.c.b16 %v417, %v416
      %v421 = vunpack.c.l.b16 %v412
      %v422 = vunpack.c.h.b16 %v412
      %v423 = vunpack.c.l.b16 %v413
      %v424 = vunpack.c.h.b16 %v413
      %v425 = vpack.c.b16 %v423, %v421
      %v426 = vpack.c.b16 %v424, %v422
      %vm429 = vcmask 130048
      %v431 = vsel %vm429, %v418, 0
      %433 = vmatpush.bf16.msra.mxu0 0
      %434 = vmatpush.bf16.msra.mxu0 0
      %435 = vmatpush.bf16.msra.mxu0 0
      %436 = vmatpush.bf16.msra.mxu0 0
      %437 = vmatpush.bf16.msra.mxu0 0
      %438 = vmatpush.bf16.msra.mxu0 0
      %439 = vmatpush.bf16.msra.mxu0 0
      %440 = vmatpush.bf16.msra.mxu0 %v425
      %441 = vmatmul.bf16.gmra.mxu0 %v431
      %v442 = vpop.f32.mrf.mxu0
      %v443 = vadd.f32 0.0, %v442
      %v444 = vpop.f32.mrf.mxu0
      %v445 = vadd.f32 0.0, %v444
      %446 = vdwg.mxu0
      %447 = vmatpush.bf16.msra.mxu0 0
      %448 = vmatpush.bf16.msra.mxu0 0
      %449 = vmatpush.bf16.msra.mxu0 0
      %450 = vmatpush.bf16.msra.mxu0 0
      %451 = vmatpush.bf16.msra.mxu0 0
      %452 = vmatpush.bf16.msra.mxu0 0
      %453 = vmatpush.bf16.msra.mxu0 0
      %454 = vmatpush.bf16.msra.mxu0 %v426
      %455 = vmatmul.bf16.gmra.mxu0 %v431
      %v456 = vpop.f32.mrf.mxu0
      %v457 = vadd.f32 0.0, %v456
      %v458 = vpop.f32.mrf.mxu0
      %v459 = vadd.f32 0.0, %v458
      %460 = vdwg.mxu0
      %v461 = vadd.f32 %v406, %v443
      %v462 = vadd.f32 %v407, %v457
      %v463 = vadd.f32 %v408, %v445
      %v464 = vadd.f32 %v409, %v459
      %465 = vst [vmem:[#allocation2] sm:$0xff] %v461
      %466 = vst [vmem:[#allocation2 + $0x8] sm:$0xff] %v462
      %467 = vst [vmem:[#allocation2 + $0x10] sm:$0xff] %v463
      %468 = vst [vmem:[#allocation2 + $0x18] sm:$0xff] %v464
      // Predicated region
      $region37: #{model_forward.5} parent=31 // pred_check
        %p469 = pneg %p398
      $region38: #{model_forward.5} parent=31 // pred_check_branch
        %471 = sbr.rel (%p469) target = $region40
      $region39: #{model_forward.5} parent=31 // pred_region
        %v472 = vld [vmem:[%s366] sm:$0xf]
        %v473 = vld [vmem:[#allocation2] sm:$0xff]
        %v474 = vld [vmem:[#allocation2 + $0x8] sm:$0xff]
        %v475 = vld [vmem:[#allocation2 + $0x10] sm:$0xff]
        %v476 = vld [vmem:[#allocation2 + $0x18] sm:$0xff]
        %v478 = vperm.slane %v472, 0
        %v479 = vperm.slane %v472, 2
        %v482 = vperm.slane %v478, 0
        %v483 = vperm.slane %v479, 0
        %v484 = vadd.f32 %v473, %v482
        %v485 = vadd.f32 %v474, %v483
        %v486 = vadd.f32 %v475, %v482
        %v487 = vadd.f32 %v476, %v483
        %vm488 = vcmp.gt.f32.partialorder %v484, 0.0
        %vm489 = vcmp.gt.f32.partialorder %v485, 0.0
        %vm490 = vcmp.gt.f32.partialorder %v486, 0.0
        %vm491 = vcmp.gt.f32.partialorder %v487, 0.0
        %v492 = vperm.slane %v472, 1
        %v493 = vperm.slane %v472, 3
        %v496 = vperm.slane %v492, 1
        %v497 = vperm.slane %v493, 1
        %v498 = vmul.f32 %v496, %v484
        %v499 = vmul.f32 %v497, %v485
        %v500 = vmul.f32 %v496, %v486
        %v501 = vmul.f32 %v497, %v487
        %v502 = vsel %vm488, %v484, %v498
        %v503 = vsel %vm489, %v485, %v499
        %v504 = vsel %vm490, %v486, %v500
        %v505 = vsel %vm491, %v487, %v501
        %506 = vst [vmem:[%s380] sm:$0xff] %v502
        %507 = vst [vmem:[%s380 + $0x8] sm:$0xff] %v503
        %508 = vst [vmem:[%s380 + $0x10] sm:$0xff] %v504
        %509 = vst [vmem:[%s380 + $0x18] sm:$0xff] %v505
        %v510 = vpack.c.bf16 %v503, %v502
        %v511 = vpack.c.bf16 %v505, %v504
        %512 = vst [vmem:[%s395] sm:$0xff] %v510
        %513 = vst [vmem:[%s395 + $0x8] sm:$0xff] %v511
      $region40: #{model_forward.5} parent=31 // pred_fallthru
        _
      %s514 = smul.u32 2, %s24
      %p515 = scmp.lt.s32.totalorder %s22, 1
      %s516 = scalar_select %p515, %s22, 1
      %p517 = scmp.lt.s32.totalorder %s23, 1
      %s518 = scalar_select %p517, %s23, 1
      %p519 = scmp.lt.s32.totalorder %s514, 1
      %s520 = scalar_select %p519, %s514, 1
      %s521 = smul.addr %s520, 2
      %s522 = smul.addr %s518, 4
      %s523 = sadd.s32 %s521, %s522
      %s524 = smul.addr %s516, 8
      %s525 = sadd.s32 %s523, %s524
      %s526 = smul.addr %s525, 8
      %s527 = scalar_lea.vmem %s3, %s526
      %s528 = smul.u32 2, %s24
      %p529 = scmp.lt.s32.totalorder %s22, 1
      %s530 = scalar_select %p529, %s22, 1
      %p531 = scmp.lt.s32.totalorder %s23, 1
      %s532 = scalar_select %p531, %s23, 1
      %p533 = scmp.lt.s32.totalorder %s528, 1
      %s534 = scalar_select %p533, %s528, 1
      %s535 = smul.addr %s534, 2
      %s536 = smul.addr %s532, 4
      %s537 = sadd.s32 %s535, %s536
      %s538 = smul.addr %s530, 8
      %s539 = sadd.s32 %s537, %s538
      %s540 = smul.addr %s539, 4
      %s541 = scalar_lea.vmem %s4, %s540
      // Predicated region
      $region41: #{model_forward.5} parent=31 // pred_check
        %p542 = pneg %p152
      $region42: #{model_forward.5} parent=31 // pred_check_branch
        %544 = sbr.rel (%p542) target = $region44
      $region43: #{model_forward.5} parent=31 // pred_region
        %s545 = smul.u32 2, %s24
      $region44: #{model_forward.5} parent=31 // pred_fallthru
        _
      // Predicated region
      $region45: #{model_forward.5} parent=31 // pred_check
        %p546 = pneg %p182
      $region46: #{model_forward.5} parent=31 // pred_check_branch
        %548 = sbr.rel (%p546) target = $region48
      $region47: #{model_forward.5} parent=31 // pred_region
        %s549 = smul.u32 2, %s24
      $region48: #{model_forward.5} parent=31 // pred_fallthru
        _
    $region32: #{model_forward.5} parent=5 // pred_fallthru
      _
    %p550 = scmp.le.s32.totalorder 2, %s11
    // Predicated region
    $region49: #{model_forward.5} parent=5 // pred_check
      %p551 = pneg %p550
    $region50: #{model_forward.5} parent=5 // pred_check_branch
      %553 = sbr.rel (%p551) target = $region52
    $region51: #{model_forward.5} parent=5 // pred_region
      %s554 = ssub.s32 %s11, 2
      // Predicated region
      $region53: #{model_forward.5} parent=51 // pred_check
        %p555 = pneg %p158
      $region54: #{model_forward.5} parent=51 // pred_check_branch
        %557 = sbr.rel (%p555) target = $region56
      $region55: #{model_forward.5} parent=51 // pred_region
        %s558 = smul.u32 2, %s28
        %p559 = scmp.lt.s32.totalorder %s26, 1
        %s560 = scalar_select %p559, %s26, 1
        %p561 = scmp.lt.s32.totalorder %s27, 1
        %s562 = scalar_select %p561, %s27, 1
        %p563 = scmp.lt.s32.totalorder %s558, 1
        %s564 = scalar_select %p563, %s558, 1
        %s565 = smul.addr %s564, 2
        %s566 = smul.addr %s562, 4
        %s567 = sadd.s32 %s565, %s566
        %s568 = smul.addr %s560, 8
        %s569 = sadd.s32 %s567, %s568
        %s570 = smul.addr %s569, 8
        %s571 = scalar_lea.vmem %s3, %s570
      $region56: #{model_forward.5} parent=51 // pred_fallthru
        _
      // Predicated region
      $region57: #{model_forward.5} parent=51 // pred_check
        %p572 = pneg %p188
      $region58: #{model_forward.5} parent=51 // pred_check_branch
        %574 = sbr.rel (%p572) target = $region60
      $region59: #{model_forward.5} parent=51 // pred_region
        %s575 = smul.u32 2, %s28
        %p576 = scmp.lt.s32.totalorder %s26, 1
        %s577 = scalar_select %p576, %s26, 1
        %p578 = scmp.lt.s32.totalorder %s27, 1
        %s579 = scalar_select %p578, %s27, 1
        %p580 = scmp.lt.s32.totalorder %s575, 1
        %s581 = scalar_select %p580, %s575, 1
        %s582 = smul.addr %s581, 2
        %s583 = smul.addr %s579, 4
        %s584 = sadd.s32 %s582, %s583
        %s585 = smul.addr %s577, 8
        %s586 = sadd.s32 %s584, %s585
        %s587 = smul.addr %s586, 4
        %s588 = scalar_lea.vmem %s4, %s587
      $region60: #{model_forward.5} parent=51 // pred_fallthru
        _
    $region52: #{model_forward.5} parent=5 // pred_fallthru
      _
  $region6: #{model_forward.5} parent=0 // loop_footer
    %s15 = sadd.s32 1, %s11
  $region7: #{model_forward.5} parent=0 // loop_footer_branch
    %10 = sbr.rel target = $region3
  $region8: #{model_forward.5} parent=0 // loop_exit
    _

// kernel: model_forward.4
$region0: #{model_forward.4}
  #allocation0 [shape = 'u32[]', space=smem, size = 0x4, offset = 0x4, fixed_abs, tag = 'smem constant byte address 0x4 - core index']
  #allocation1 [shape = 'u32[72,128]{1,0:T(1,128)}', space=vmem, size = 0x9000, scoped, tag = 'internal scratch']
  %s0 = inlined_call_operand.vmem [shape: bf16[2,16,256], index: 0, kind: input, shape index: {}]
  %s1 = inlined_call_operand.vmem [shape: bf16[2,128,128], index: 1, kind: input, shape index: {}]
  %s2 = inlined_call_operand.vmem [shape: bf16[2,2,16,256], index: 2, kind: output, shape index: {}]
  %s3 = sld [smem:[#allocation0]]
  $region41: #{model_forward.4} parent=0
    _
  %s5 = ssub.s32 1, %s3
  %s6 = scalar_select 0, %s5, %s3
  loop: start=0, step=1, limit=6
  $region2: #{model_forward.4} parent=0 // loop_pre_header
    _
  $region3: #{model_forward.4} parent=0 // loop_header
    %s8 = sphi 0, %s12
    %p9 = scmp.ge.s32.totalorder %s8, 6
    %s15 = sphi 0, %s34
    %s16 = sphi 0, %s30
    %s17 = sphi 0, %s26
    %s18 = sphi 0, %s15
    %s19 = sphi 0, %s16
    %s20 = sphi 0, %s17
    %s21 = sphi 0, %s18
    %s22 = sphi 0, %s19
    %s23 = sphi 0, %s20
    %s39 = sphi 0, %s41
    %s42 = sphi 0, %s39
    %s43 = sphi 0, %s42
    %s59 = sphi 0, %s43
    %s65 = sphi 0, %s67
    %s68 = sphi 0, %s65
    %s69 = sphi 0, %s68
    %s85 = sphi 0, %s69
    %s95 = sphi 0, %s97
    %s98 = sphi 0, %s95
    %s99 = sphi 0, %s98
    %s115 = sphi 0, %s99
  $region4: #{model_forward.4} parent=0 // loop_header_branch
    %11 = sbr.rel (%p9) target = $region8
  $region5: #{model_forward.4} parent=0 // loop_body
    %s13 = ssub.s32 %s8, 1
    %s14 = ssub.s32 %s8, 2
    %s24 = sadd.s32 1, %s17
    %p25 = scmp.ge.s32.totalorder %s24, 1
    %s26 = scalar_select %p25, 0, %s24
    %s27 = sadd.s32 1, %s16
    %s28 = scalar_select %p25, %s27, %s16
    %p29 = scmp.ge.s32.totalorder %s28, 2
    %s30 = scalar_select %p29, 0, %s28
    %s31 = sadd.s32 1, %s15
    %s32 = scalar_select %p29, %s31, %s15
    %p33 = scmp.ge.s32.totalorder %s32, 2
    %s34 = scalar_select %p33, 0, %s32
    %s35 = ssub.s32 %s16, %s30
    %s36 = ssub.s32 %s17, %s26
    %s37 = sor.u32 %s35, %s36
    %p38 = scmp.eq.s32.totalorder %s37, 0
    %s40 = sadd.s32 %s39, 1
    %s41 = scalar_select %p38, %s39, %s40
    %p44 = pneg %p38
    %p45 = scmp.eq.s32.totalorder %s8, 3
    %p46 = por %p44, %p45
    %p47 = scmp.ne.s32.totalorder %s39, %s42
    %p48 = scmp.eq.s32.totalorder %s8, 0
    %p49 = por %p47, %p48
    %p50 = scmp.ne.s32.totalorder %s39, %s42
    %p51 = scmp.eq.s32.totalorder %s13, 3
    %p52 = por %p50, %p51
    %p53 = scmp.ne.s32.totalorder %s42, %s43
    %p54 = scmp.eq.s32.totalorder %s13, 0
    %p55 = por %p53, %p54
    %p56 = scmp.ne.s32.totalorder %s42, %s43
    %p57 = scmp.eq.s32.totalorder %s14, 3
    %p58 = por %p56, %p57
    %p60 = scmp.ne.s32.totalorder %s43, %s59
    %p61 = scmp.eq.s32.totalorder %s14, 0
    %p62 = por %p60, %p61
    %s63 = ssub.s32 %s15, %s34
    %p64 = scmp.eq.s32.totalorder %s63, 0
    %s66 = sadd.s32 %s65, 1
    %s67 = scalar_select %p64, %s65, %s66
    %p70 = pneg %p64
    %p71 = scmp.eq.s32.totalorder %s8, 3
    %p72 = por %p70, %p71
    %p73 = scmp.ne.s32.totalorder %s65, %s68
    %p74 = scmp.eq.s32.totalorder %s8, 0
    %p75 = por %p73, %p74
    %p76 = scmp.ne.s32.totalorder %s65, %s68
    %p77 = scmp.eq.s32.totalorder %s13, 3
    %p78 = por %p76, %p77
    %p79 = scmp.ne.s32.totalorder %s68, %s69
    %p80 = scmp.eq.s32.totalorder %s13, 0
    %p81 = por %p79, %p80
    %p82 = scmp.ne.s32.totalorder %s68, %s69
    %p83 = scmp.eq.s32.totalorder %s14, 3
    %p84 = por %p82, %p83
    %p86 = scmp.ne.s32.totalorder %s69, %s85
    %p87 = scmp.eq.s32.totalorder %s14, 0
    %p88 = por %p86, %p87
    %s89 = ssub.s32 %s15, %s34
    %s90 = ssub.s32 %s16, %s30
    %s91 = sor.u32 %s89, %s90
    %s92 = ssub.s32 %s17, %s26
    %s93 = sor.u32 %s91, %s92
    %p94 = scmp.eq.s32.totalorder %s93, 0
    %s96 = sadd.s32 %s95, 1
    %s97 = scalar_select %p94, %s95, %s96
    %p100 = pneg %p94
    %p101 = scmp.eq.s32.totalorder %s8, 3
    %p102 = por %p100, %p101
    %p103 = scmp.ne.s32.totalorder %s95, %s98
    %p104 = scmp.eq.s32.totalorder %s8, 0
    %p105 = por %p103, %p104
    %p106 = scmp.ne.s32.totalorder %s95, %s98
    %p107 = scmp.eq.s32.totalorder %s13, 3
    %p108 = por %p106, %p107
    %p109 = scmp.ne.s32.totalorder %s98, %s99
    %p110 = scmp.eq.s32.totalorder %s13, 0
    %p111 = por %p109, %p110
    %p112 = scmp.ne.s32.totalorder %s98, %s99
    %p113 = scmp.eq.s32.totalorder %s14, 3
    %p114 = por %p112, %p113
    %p116 = scmp.ne.s32.totalorder %s99, %s115
    %p117 = scmp.eq.s32.totalorder %s14, 0
    %p118 = por %p116, %p117
    %p119 = scmp.le.s32.totalorder 1, %s8
    %p120 = scmp.lt.s32.totalorder %s8, 5
    %p121 = pnand %p119, %p120
    %p122 = pneg %p121
    // Predicated region
    $region9: #{model_forward.4} parent=5 // pred_check
      _
    $region10: #{model_forward.4} parent=5 // pred_check_branch
      %124 = sbr.rel (%p121) target = $region12
    $region11: #{model_forward.4} parent=5 // pred_region
      %s125 = ssub.s32 %s8, 1
    $region12: #{model_forward.4} parent=5 // pred_fallthru
      _
    %p126 = scmp.lt.s32.totalorder %s8, 4
    // Predicated region
    $region13: #{model_forward.4} parent=5 // pred_check
      %p127 = pneg %p126
    $region14: #{model_forward.4} parent=5 // pred_check_branch
      %129 = sbr.rel (%p127) target = $region16
    $region15: #{model_forward.4} parent=5 // pred_region
      // Predicated region
      $region17: #{model_forward.4} parent=15 // pred_check
        %p130 = pneg %p49
      $region18: #{model_forward.4} parent=15 // pred_check_branch
        %132 = sbr.rel (%p130) target = $region20
      $region19: #{model_forward.4} parent=15 // pred_region
        %s133 = smul.u32 2, %s17
        %p134 = scmp.lt.s32.totalorder %s16, 1
        %s135 = scalar_select %p134, %s16, 1
        %p136 = scmp.lt.s32.totalorder %s133, 1
        %s137 = scalar_select %p136, %s133, 1
        %s138 = smul.addr %s137, 2
        %s139 = smul.addr %s135, 4
        %s140 = sadd.s32 %s138, %s139
        %s141 = smul.addr %s140, 4
        %s142 = scalar_lea.vmem %s0, %s141
        %s143 = smul.u32 2, %s17
      $region20: #{model_forward.4} parent=15 // pred_fallthru
        _
      // Predicated region
      $region21: #{model_forward.4} parent=15 // pred_check
        %p144 = pneg %p75
      $region22: #{model_forward.4} parent=15 // pred_check_branch
        %146 = sbr.rel (%p144) target = $region24
      $region23: #{model_forward.4} parent=15 // pred_region
        %p147 = scmp.lt.s32.totalorder %s15, 1
        %s148 = scalar_select %p147, %s15, 1
        %s149 = smul.addr %s148, 16
        %s150 = smul.addr %s149, 4
        %s151 = scalar_lea.vmem %s1, %s150
      $region24: #{model_forward.4} parent=15 // pred_fallthru
        _
    $region16: #{model_forward.4} parent=5 // pred_fallthru
      _
    %p152 = scmp.le.s32.totalorder 1, %s8
    %p153 = scmp.lt.s32.totalorder %s8, 5
    %p154 = pnand %p152, %p153
    %p155 = pneg %p154
    // Predicated region
    $region25: #{model_forward.4} parent=5 // pred_check
      _
    $region26: #{model_forward.4} parent=5 // pred_check_branch
      %157 = sbr.rel (%p154) target = $region28
    $region27: #{model_forward.4} parent=5 // pred_region
      %s158 = ssub.s32 %s8, 1
      %s159 = smul.u32 2, %s20
      %p160 = scmp.lt.s32.totalorder %s19, 1
      %s161 = scalar_select %p160, %s19, 1
      %p162 = scmp.lt.s32.totalorder %s159, 1
      %s163 = scalar_select %p162, %s159, 1
      %s164 = smul.addr %s163, 2
      %s165 = smul.addr %s161, 4
      %s166 = sadd.s32 %s164, %s165
      %s167 = smul.addr %s166, 4
      %s168 = scalar_lea.vmem %s0, %s167
      %p169 = pneg %p55
      %p170 = pneg %p52
      %p171 = scmp.lt.s32.totalorder %s18, 1
      %s172 = scalar_select %p171, %s18, 1
      %s173 = smul.addr %s172, 16
      %s174 = smul.addr %s173, 4
      %s175 = scalar_lea.vmem %s1, %s174
      %p176 = pneg %p81
      %p177 = pneg %p78
      %p178 = pneg %p111
      %p179 = pneg %p108
      %s180 = smul.u32 2, %s20
      %p181 = scmp.lt.s32.totalorder %s18, 1
      %s182 = scalar_select %p181, %s18, 1
      %p183 = scmp.lt.s32.totalorder %s19, 1
      %s184 = scalar_select %p183, %s19, 1
      %p185 = scmp.lt.s32.totalorder %s180, 1
      %s186 = scalar_select %p185, %s180, 1
      %s187 = smul.addr %s186, 2
      %s188 = smul.addr %s184, 4
      %s189 = sadd.s32 %s187, %s188
      %s190 = smul.addr %s182, 8
      %s191 = sadd.s32 %s189, %s190
      %s192 = smul.addr %s191, 4
      %s193 = scalar_lea.vmem %s2, %s192
      %s194 = smul.u32 2, %s20
      %p195 = scmp.lt.s32.totalorder %s19, 1
      %s196 = scalar_select %p195, %s19, 1
      %p197 = scmp.lt.s32.totalorder %s194, 1
      %s198 = scalar_select %p197, %s194, 1
      %s199 = smul.addr %s198, 2
      %s200 = smul.addr %s196, 4
      %s201 = sadd.s32 %s199, %s200
      %s202 = smul.addr %s201, 4
      %s203 = scalar_lea.vmem %s0, %s202
      %s204 = smul.u32 2, %s20
      %p205 = scmp.lt.s32.totalorder %s18, 1
      %s206 = scalar_select %p205, %s18, 1
      %s207 = smul.addr %s206, 16
      %s208 = smul.addr %s207, 4
      %s209 = scalar_lea.vmem %s1, %s208
      %s210 = smul.u32 2, %s20
      %p211 = scmp.lt.s32.totalorder %s18, 1
      %s212 = scalar_select %p211, %s18, 1
      %p213 = scmp.lt.s32.totalorder %s19, 1
      %s214 = scalar_select %p213, %s19, 1
      %p215 = scmp.lt.s32.totalorder %s210, 1
      %s216 = scalar_select %p215, %s210, 1
      %s217 = smul.addr %s216, 2
      %s218 = smul.addr %s214, 4
      %s219 = sadd.s32 %s217, %s218
      %s220 = smul.addr %s212, 8
      %s221 = sadd.s32 %s219, %s220
      %s222 = smul.addr %s221, 4
      %s223 = scalar_lea.vmem %s2, %s222
      %s224 = smul.u32 2, %s20
      %v225 = vld [vmem:[%s209] sm:$0xf]
      %v226 = vld [vmem:[%s209 + $0x4] sm:$0xf]
      %v227 = vld [vmem:[%s209 + $0x8] sm:$0xf]
      %v228 = vld [vmem:[%s209 + $0xc] sm:$0xf]
      %v229 = vld [vmem:[%s209 + $0x10] sm:$0xf]
      %v230 = vld [vmem:[%s209 + $0x14] sm:$0xf]
      %v231 = vld [vmem:[%s209 + $0x18] sm:$0xf]
      %v232 = vld [vmem:[%s209 + $0x1c] sm:$0xf]
      %v233 = vld [vmem:[%s209 + $0x20] sm:$0xf]
      %v234 = vld [vmem:[%s209 + $0x24] sm:$0xf]
      %v235 = vld [vmem:[%s209 + $0x28] sm:$0xf]
      %v236 = vld [vmem:[%s209 + $0x2c] sm:$0xf]
      %v237 = vld [vmem:[%s209 + $0x30] sm:$0xf]
      %v238 = vld [vmem:[%s209 + $0x34] sm:$0xf]
      %v239 = vld [vmem:[%s209 + $0x38] sm:$0xf]
      %v240 = vld [vmem:[%s209 + $0x3c] sm:$0xf]
      %v241 = vld [vmem:[%s203] sm:$0xf]
      %v242 = vld [vmem:[%s203 + $0x8] sm:$0xf]
      %v245 = vunpack.c.l.b16 %v241
      %v246 = vunpack.c.l.b16 %v242
      %v247 = vpack.c.b16 %v246, %v245
      %v265 = vunpack.c.l.b16 %v225
      %v266 = vunpack.c.l.b16 %v226
      %v267 = vunpack.c.l.b16 %v227
      %v268 = vunpack.c.l.b16 %v228
      %v269 = vunpack.c.l.b16 %v229
      %v270 = vunpack.c.l.b16 %v230
      %v271 = vunpack.c.l.b16 %v231
      %v272 = vunpack.c.l.b16 %v232
      %v273 = vunpack.c.l.b16 %v233
      %v274 = vunpack.c.l.b16 %v234
      %v275 = vunpack.c.l.b16 %v235
      %v276 = vunpack.c.l.b16 %v236
      %v277 = vunpack.c.l.b16 %v237
      %v278 = vunpack.c.l.b16 %v238
      %v279 = vunpack.c.l.b16 %v239
      %v280 = vunpack.c.l.b16 %v240
      %v281 = vpack.c.b16 %v266, %v265
      %v282 = vpack.c.b16 %v268, %v267
      %v283 = vpack.c.b16 %v270, %v269
      %v284 = vpack.c.b16 %v272, %v271
      %v285 = vpack.c.b16 %v274, %v273
      %v286 = vpack.c.b16 %v276, %v275
      %v287 = vpack.c.b16 %v278, %v277
      %v288 = vpack.c.b16 %v280, %v279
      %297 = vmatpush.bf16.msra.mxu0 %v288
      %298 = vmatpush.bf16.msra.mxu0 %v287
      %299 = vmatpush.bf16.msra.mxu0 %v286
      %300 = vmatpush.bf16.msra.mxu0 %v285
      %301 = vmatpush.bf16.msra.mxu0 %v284
      %302 = vmatpush.bf16.msra.mxu0 %v283
      %303 = vmatpush.bf16.msra.mxu0 %v282
      %304 = vmatpush.bf16.msra.mxu0 %v281
      %305 = vmatmul.bf16.gmra.mxu0 %v247
      %v306 = vpop.f32.mrf.mxu0
      %v307 = vadd.f32 0.0, %v306
      %v308 = vpop.f32.mrf.mxu0
      %v309 = vadd.f32 0.0, %v308
      %310 = vdwg.mxu0
      %v311 = vld [vmem:[%s203 + $0x4] sm:$0xf]
      %v312 = vld [vmem:[%s203 + $0xc] sm:$0xf]
      %v315 = vunpack.c.l.b16 %v311
      %v316 = vunpack.c.l.b16 %v312
      %v317 = vpack.c.b16 %v316, %v315
      %319 = vmatpush.bf16.msra.mxu0 %v288
      %320 = vmatpush.bf16.msra.mxu0 %v287
      %321 = vmatpush.bf16.msra.mxu0 %v286
      %322 = vmatpush.bf16.msra.mxu0 %v285
      %323 = vmatpush.bf16.msra.mxu0 %v284
      %324 = vmatpush.bf16.msra.mxu0 %v283
      %325 = vmatpush.bf16.msra.mxu0 %v282
      %326 = vmatpush.bf16.msra.mxu0 %v281
      %327 = vmatmul.bf16.gmra.mxu0 %v317
      %v328 = vpop.f32.mrf.mxu0
      %v329 = vadd.f32 0.0, %v328
      %v330 = vpop.f32.mrf.mxu0
      %v331 = vadd.f32 0.0, %v330
      %332 = vdwg.mxu0
      %v333 = vpack.c.bf16 %v329, %v307
      %v334 = vpack.c.bf16 %v331, %v309
      %335 = vst [vmem:[%s223] sm:$0xff] %v333
      %336 = vst [vmem:[%s223 + $0x8] sm:$0xff] %v334
      %s337 = smul.u32 2, %s20
      %p338 = scmp.lt.s32.totalorder %s18, 1
      %s339 = scalar_select %p338, %s18, 1
      %p340 = scmp.lt.s32.totalorder %s19, 1
      %s341 = scalar_select %p340, %s19, 1
      %p342 = scmp.lt.s32.totalorder %s337, 1
      %s343 = scalar_select %p342, %s337, 1
      %s344 = smul.addr %s343, 2
      %s345 = smul.addr %s341, 4
      %s346 = sadd.s32 %s344, %s345
      %s347 = smul.addr %s339, 8
      %s348 = sadd.s32 %s346, %s347
      %s349 = smul.addr %s348, 4
      %s350 = scalar_lea.vmem %s2, %s349
      // Predicated region
      $region29: #{model_forward.4} parent=27 // pred_check
        %p351 = pneg %p108
      $region30: #{model_forward.4} parent=27 // pred_check_branch
        %353 = sbr.rel (%p351) target = $region32
      $region31: #{model_forward.4} parent=27 // pred_region
        %s354 = smul.u32 2, %s20
      $region32: #{model_forward.4} parent=27 // pred_fallthru
        _
    $region28: #{model_forward.4} parent=5 // pred_fallthru
      _
    %p355 = scmp.le.s32.totalorder 2, %s8
    // Predicated region
    $region33: #{model_forward.4} parent=5 // pred_check
      %p356 = pneg %p355
    $region34: #{model_forward.4} parent=5 // pred_check_branch
      %358 = sbr.rel (%p356) target = $region36
    $region35: #{model_forward.4} parent=5 // pred_region
      %s359 = ssub.s32 %s8, 2
      // Predicated region
      $region37: #{model_forward.4} parent=35 // pred_check
        %p360 = pneg %p114
      $region38: #{model_forward.4} parent=35 // pred_check_branch
        %362 = sbr.rel (%p360) target = $region40
      $region39: #{model_forward.4} parent=35 // pred_region
        %s363 = smul.u32 2, %s23
        %p364 = scmp.lt.s32.totalorder %s21, 1
        %s365 = scalar_select %p364, %s21, 1
        %p366 = scmp.lt.s32.totalorder %s22, 1
        %s367 = scalar_select %p366, %s22, 1
        %p368 = scmp.lt.s32.totalorder %s363, 1
        %s369 = scalar_select %p368, %s363, 1
        %s370 = smul.addr %s369, 2
        %s371 = smul.addr %s367, 4
        %s372 = sadd.s32 %s370, %s371
        %s373 = smul.addr %s365, 8
        %s374 = sadd.s32 %s372, %s373
        %s375 = smul.addr %s374, 4
        %s376 = scalar_lea.vmem %s2, %s375
      $region40: #{model_forward.4} parent=35 // pred_fallthru
        _
    $region36: #{model_forward.4} parent=5 // pred_fallthru
      _
  $region6: #{model_forward.4} parent=0 // loop_footer
    %s12 = sadd.s32 1, %s8
  $region7: #{model_forward.4} parent=0 // loop_footer_branch
    %7 = sbr.rel target = $region3
  $region8: #{model_forward.4} parent=0 // loop_exit
    _

// kernel: model_forward.6
$region0: #{model_forward.6}
  #allocation0 [shape = 'u32[]', space=smem, size = 0x4, offset = 0x4, fixed_abs, tag = 'smem constant byte address 0x4 - core index']
  #allocation1 [shape = 'u32[72,128]{1,0:T(1,128)}', space=vmem, size = 0x9000, scoped, tag = 'internal scratch']
  %s0 = inlined_call_operand.vmem [shape: bf16[2,2,16,256], index: 0, kind: input, shape index: {}]
  %s1 = inlined_call_operand.vmem [shape: bf16[2,128,128], index: 1, kind: input, shape index: {}]
  %s2 = inlined_call_operand.vmem [shape: bf16[2,2,16,256], index: 2, kind: output, shape index: {}]
  %s3 = sld [smem:[#allocation0]]
  $region41: #{model_forward.6} parent=0
    _
  %s5 = ssub.s32 1, %s3
  %s6 = scalar_select 0, %s5, %s3
  loop: start=0, step=1, limit=6
  $region2: #{model_forward.6} parent=0 // loop_pre_header
    _
  $region3: #{model_forward.6} parent=0 // loop_header
    %s8 = sphi 0, %s12
    %p9 = scmp.ge.s32.totalorder %s8, 6
    %s15 = sphi 0, %s34
    %s16 = sphi 0, %s30
    %s17 = sphi 0, %s26
    %s18 = sphi 0, %s15
    %s19 = sphi 0, %s16
    %s20 = sphi 0, %s17
    %s21 = sphi 0, %s18
    %s22 = sphi 0, %s19
    %s23 = sphi 0, %s20
    %s41 = sphi 0, %s43
    %s44 = sphi 0, %s41
    %s45 = sphi 0, %s44
    %s61 = sphi 0, %s45
    %s67 = sphi 0, %s69
    %s70 = sphi 0, %s67
    %s71 = sphi 0, %s70
    %s87 = sphi 0, %s71
    %s97 = sphi 0, %s99
    %s100 = sphi 0, %s97
    %s101 = sphi 0, %s100
    %s117 = sphi 0, %s101
  $region4: #{model_forward.6} parent=0 // loop_header_branch
    %11 = sbr.rel (%p9) target = $region8
  $region5: #{model_forward.6} parent=0 // loop_body
    %s13 = ssub.s32 %s8, 1
    %s14 = ssub.s32 %s8, 2
    %s24 = sadd.s32 1, %s17
    %p25 = scmp.ge.s32.totalorder %s24, 1
    %s26 = scalar_select %p25, 0, %s24
    %s27 = sadd.s32 1, %s16
    %s28 = scalar_select %p25, %s27, %s16
    %p29 = scmp.ge.s32.totalorder %s28, 2
    %s30 = scalar_select %p29, 0, %s28
    %s31 = sadd.s32 1, %s15
    %s32 = scalar_select %p29, %s31, %s15
    %p33 = scmp.ge.s32.totalorder %s32, 2
    %s34 = scalar_select %p33, 0, %s32
    %s35 = ssub.s32 %s15, %s34
    %s36 = ssub.s32 %s16, %s30
    %s37 = sor.u32 %s35, %s36
    %s38 = ssub.s32 %s17, %s26
    %s39 = sor.u32 %s37, %s38
    %p40 = scmp.eq.s32.totalorder %s39, 0
    %s42 = sadd.s32 %s41, 1
    %s43 = scalar_select %p40, %s41, %s42
    %p46 = pneg %p40
    %p47 = scmp.eq.s32.totalorder %s8, 3
    %p48 = por %p46, %p47
    %p49 = scmp.ne.s32.totalorder %s41, %s44
    %p50 = scmp.eq.s32.totalorder %s8, 0
    %p51 = por %p49, %p50
    %p52 = scmp.ne.s32.totalorder %s41, %s44
    %p53 = scmp.eq.s32.totalorder %s13, 3
    %p54 = por %p52, %p53
    %p55 = scmp.ne.s32.totalorder %s44, %s45
    %p56 = scmp.eq.s32.totalorder %s13, 0
    %p57 = por %p55, %p56
    %p58 = scmp.ne.s32.totalorder %s44, %s45
    %p59 = scmp.eq.s32.totalorder %s14, 3
    %p60 = por %p58, %p59
    %p62 = scmp.ne.s32.totalorder %s45, %s61
    %p63 = scmp.eq.s32.totalorder %s14, 0
    %p64 = por %p62, %p63
    %s65 = ssub.s32 %s15, %s34
    %p66 = scmp.eq.s32.totalorder %s65, 0
    %s68 = sadd.s32 %s67, 1
    %s69 = scalar_select %p66, %s67, %s68
    %p72 = pneg %p66
    %p73 = scmp.eq.s32.totalorder %s8, 3
    %p74 = por %p72, %p73
    %p75 = scmp.ne.s32.totalorder %s67, %s70
    %p76 = scmp.eq.s32.totalorder %s8, 0
    %p77 = por %p75, %p76
    %p78 = scmp.ne.s32.totalorder %s67, %s70
    %p79 = scmp.eq.s32.totalorder %s13, 3
    %p80 = por %p78, %p79
    %p81 = scmp.ne.s32.totalorder %s70, %s71
    %p82 = scmp.eq.s32.totalorder %s13, 0
    %p83 = por %p81, %p82
    %p84 = scmp.ne.s32.totalorder %s70, %s71
    %p85 = scmp.eq.s32.totalorder %s14, 3
    %p86 = por %p84, %p85
    %p88 = scmp.ne.s32.totalorder %s71, %s87
    %p89 = scmp.eq.s32.totalorder %s14, 0
    %p90 = por %p88, %p89
    %s91 = ssub.s32 %s15, %s34
    %s92 = ssub.s32 %s16, %s30
    %s93 = sor.u32 %s91, %s92
    %s94 = ssub.s32 %s17, %s26
    %s95 = sor.u32 %s93, %s94
    %p96 = scmp.eq.s32.totalorder %s95, 0
    %s98 = sadd.s32 %s97, 1
    %s99 = scalar_select %p96, %s97, %s98
    %p102 = pneg %p96
    %p103 = scmp.eq.s32.totalorder %s8, 3
    %p104 = por %p102, %p103
    %p105 = scmp.ne.s32.totalorder %s97, %s100
    %p106 = scmp.eq.s32.totalorder %s8, 0
    %p107 = por %p105, %p106
    %p108 = scmp.ne.s32.totalorder %s97, %s100
    %p109 = scmp.eq.s32.totalorder %s13, 3
    %p110 = por %p108, %p109
    %p111 = scmp.ne.s32.totalorder %s100, %s101
    %p112 = scmp.eq.s32.totalorder %s13, 0
    %p113 = por %p111, %p112
    %p114 = scmp.ne.s32.totalorder %s100, %s101
    %p115 = scmp.eq.s32.totalorder %s14, 3
    %p116 = por %p114, %p115
    %p118 = scmp.ne.s32.totalorder %s101, %s117
    %p119 = scmp.eq.s32.totalorder %s14, 0
    %p120 = por %p118, %p119
    %p121 = scmp.le.s32.totalorder 1, %s8
    %p122 = scmp.lt.s32.totalorder %s8, 5
    %p123 = pnand %p121, %p122
    %p124 = pneg %p123
    // Predicated region
    $region9: #{model_forward.6} parent=5 // pred_check
      _
    $region10: #{model_forward.6} parent=5 // pred_check_branch
      %126 = sbr.rel (%p123) target = $region12
    $region11: #{model_forward.6} parent=5 // pred_region
      %s127 = ssub.s32 %s8, 1
    $region12: #{model_forward.6} parent=5 // pred_fallthru
      _
    %p128 = scmp.lt.s32.totalorder %s8, 4
    // Predicated region
    $region13: #{model_forward.6} parent=5 // pred_check
      %p129 = pneg %p128
    $region14: #{model_forward.6} parent=5 // pred_check_branch
      %131 = sbr.rel (%p129) target = $region16
    $region15: #{model_forward.6} parent=5 // pred_region
      // Predicated region
      $region17: #{model_forward.6} parent=15 // pred_check
        %p132 = pneg %p51
      $region18: #{model_forward.6} parent=15 // pred_check_branch
        %134 = sbr.rel (%p132) target = $region20
      $region19: #{model_forward.6} parent=15 // pred_region
        %s135 = smul.u32 2, %s17
        %p136 = scmp.lt.s32.totalorder %s15, 1
        %s137 = scalar_select %p136, %s15, 1
        %p138 = scmp.lt.s32.totalorder %s16, 1
        %s139 = scalar_select %p138, %s16, 1
        %p140 = scmp.lt.s32.totalorder %s135, 1
        %s141 = scalar_select %p140, %s135, 1
        %s142 = smul.addr %s141, 2
        %s143 = smul.addr %s139, 4
        %s144 = sadd.s32 %s142, %s143
        %s145 = smul.addr %s137, 8
        %s146 = sadd.s32 %s144, %s145
        %s147 = smul.addr %s146, 4
        %s148 = scalar_lea.vmem %s0, %s147
        %s149 = smul.u32 2, %s17
      $region20: #{model_forward.6} parent=15 // pred_fallthru
        _
      // Predicated region
      $region21: #{model_forward.6} parent=15 // pred_check
        %p150 = pneg %p77
      $region22: #{model_forward.6} parent=15 // pred_check_branch
        %152 = sbr.rel (%p150) target = $region24
      $region23: #{model_forward.6} parent=15 // pred_region
        %p153 = scmp.lt.s32.totalorder %s15, 1
        %s154 = scalar_select %p153, %s15, 1
        %s155 = smul.addr %s154, 16
        %s156 = smul.addr %s155, 4
        %s157 = scalar_lea.vmem %s1, %s156
      $region24: #{model_forward.6} parent=15 // pred_fallthru
        _
    $region16: #{model_forward.6} parent=5 // pred_fallthru
      _
    %p158 = scmp.le.s32.totalorder 1, %s8
    %p159 = scmp.lt.s32.totalorder %s8, 5
    %p160 = pnand %p158, %p159
    %p161 = pneg %p160
    // Predicated region
    $region25: #{model_forward.6} parent=5 // pred_check
      _
    $region26: #{model_forward.6} parent=5 // pred_check_branch
      %163 = sbr.rel (%p160) target = $region28
    $region27: #{model_forward.6} parent=5 // pred_region
      %s164 = ssub.s32 %s8, 1
      %s165 = smul.u32 2, %s20
      %p166 = scmp.lt.s32.totalorder %s18, 1
      %s167 = scalar_select %p166, %s18, 1
      %p168 = scmp.lt.s32.totalorder %s19, 1
      %s169 = scalar_select %p168, %s19, 1
      %p170 = scmp.lt.s32.totalorder %s165, 1
      %s171 = scalar_select %p170, %s165, 1
      %s172 = smul.addr %s171, 2
      %s173 = smul.addr %s169, 4
      %s174 = sadd.s32 %s172, %s173
      %s175 = smul.addr %s167, 8
      %s176 = sadd.s32 %s174, %s175
      %s177 = smul.addr %s176, 4
      %s178 = scalar_lea.vmem %s0, %s177
      %p179 = pneg %p57
      %p180 = pneg %p54
      %p181 = scmp.lt.s32.totalorder %s18, 1
      %s182 = scalar_select %p181, %s18, 1
      %s183 = smul.addr %s182, 16
      %s184 = smul.addr %s183, 4
      %s185 = scalar_lea.vmem %s1, %s184
      %p186 = pneg %p83
      %p187 = pneg %p80
      %p188 = pneg %p113
      %p189 = pneg %p110
      %s190 = smul.u32 2, %s20
      %p191 = scmp.lt.s32.totalorder %s18, 1
      %s192 = scalar_select %p191, %s18, 1
      %p193 = scmp.lt.s32.totalorder %s19, 1
      %s194 = scalar_select %p193, %s19, 1
      %p195 = scmp.lt.s32.totalorder %s190, 1
      %s196 = scalar_select %p195, %s190, 1
      %s197 = smul.addr %s196, 2
      %s198 = smul.addr %s194, 4
      %s199 = sadd.s32 %s197, %s198
      %s200 = smul.addr %s192, 8
      %s201 = sadd.s32 %s199, %s200
      %s202 = smul.addr %s201, 4
      %s203 = scalar_lea.vmem %s2, %s202
      %s204 = smul.u32 2, %s20
      %p205 = scmp.lt.s32.totalorder %s18, 1
      %s206 = scalar_select %p205, %s18, 1
      %p207 = scmp.lt.s32.totalorder %s19, 1
      %s208 = scalar_select %p207, %s19, 1
      %p209 = scmp.lt.s32.totalorder %s204, 1
      %s210 = scalar_select %p209, %s204, 1
      %s211 = smul.addr %s210, 2
      %s212 = smul.addr %s208, 4
      %s213 = sadd.s32 %s211, %s212
      %s214 = smul.addr %s206, 8
      %s215 = sadd.s32 %s213, %s214
      %s216 = smul.addr %s215, 4
      %s217 = scalar_lea.vmem %s0, %s216
      %s218 = smul.u32 2, %s20
      %p219 = scmp.lt.s32.totalorder %s18, 1
      %s220 = scalar_select %p219, %s18, 1
      %s221 = smul.addr %s220, 16
      %s222 = smul.addr %s221, 4
      %s223 = scalar_lea.vmem %s1, %s222
      %s224 = smul.u32 2, %s20
      %p225 = scmp.lt.s32.totalorder %s18, 1
      %s226 = scalar_select %p225, %s18, 1
      %p227 = scmp.lt.s32.totalorder %s19, 1
      %s228 = scalar_select %p227, %s19, 1
      %p229 = scmp.lt.s32.totalorder %s224, 1
      %s230 = scalar_select %p229, %s224, 1
      %s231 = smul.addr %s230, 2
      %s232 = smul.addr %s228, 4
      %s233 = sadd.s32 %s231, %s232
      %s234 = smul.addr %s226, 8
      %s235 = sadd.s32 %s233, %s234
      %s236 = smul.addr %s235, 4
      %s237 = scalar_lea.vmem %s2, %s236
      %s238 = smul.u32 2, %s20
      %v239 = vld [vmem:[%s223] sm:$0xf]
      %v240 = vld [vmem:[%s223 + $0x4] sm:$0xf]
      %v241 = vld [vmem:[%s223 + $0x8] sm:$0xf]
      %v242 = vld [vmem:[%s223 + $0xc] sm:$0xf]
      %v243 = vld [vmem:[%s223 + $0x10] sm:$0xf]
      %v244 = vld [vmem:[%s223 + $0x14] sm:$0xf]
      %v245 = vld [vmem:[%s223 + $0x18] sm:$0xf]
      %v246 = vld [vmem:[%s223 + $0x1c] sm:$0xf]
      %v247 = vld [vmem:[%s223 + $0x20] sm:$0xf]
      %v248 = vld [vmem:[%s223 + $0x24] sm:$0xf]
      %v249 = vld [vmem:[%s223 + $0x28] sm:$0xf]
      %v250 = vld [vmem:[%s223 + $0x2c] sm:$0xf]
      %v251 = vld [vmem:[%s223 + $0x30] sm:$0xf]
      %v252 = vld [vmem:[%s223 + $0x34] sm:$0xf]
      %v253 = vld [vmem:[%s223 + $0x38] sm:$0xf]
      %v254 = vld [vmem:[%s223 + $0x3c] sm:$0xf]
      %v255 = vld [vmem:[%s217] sm:$0xf]
      %v256 = vld [vmem:[%s217 + $0x8] sm:$0xf]
      %v259 = vunpack.c.l.b16 %v255
      %v260 = vunpack.c.l.b16 %v256
      %v261 = vpack.c.b16 %v260, %v259
      %v279 = vunpack.c.l.b16 %v239
      %v280 = vunpack.c.l.b16 %v240
      %v281 = vunpack.c.l.b16 %v241
      %v282 = vunpack.c.l.b16 %v242
      %v283 = vunpack.c.l.b16 %v243
      %v284 = vunpack.c.l.b16 %v244
      %v285 = vunpack.c.l.b16 %v245
      %v286 = vunpack.c.l.b16 %v246
      %v287 = vunpack.c.l.b16 %v247
      %v288 = vunpack.c.l.b16 %v248
      %v289 = vunpack.c.l.b16 %v249
      %v290 = vunpack.c.l.b16 %v250
      %v291 = vunpack.c.l.b16 %v251
      %v292 = vunpack.c.l.b16 %v252
      %v293 = vunpack.c.l.b16 %v253
      %v294 = vunpack.c.l.b16 %v254
      %v295 = vpack.c.b16 %v280, %v279
      %v296 = vpack.c.b16 %v282, %v281
      %v297 = vpack.c.b16 %v284, %v283
      %v298 = vpack.c.b16 %v286, %v285
      %v299 = vpack.c.b16 %v288, %v287
      %v300 = vpack.c.b16 %v290, %v289
      %v301 = vpack.c.b16 %v292, %v291
      %v302 = vpack.c.b16 %v294, %v293
      %311 = vmatpush.bf16.msra.mxu0 %v302
      %312 = vmatpush.bf16.msra.mxu0 %v301
      %313 = vmatpush.bf16.msra.mxu0 %v300
      %314 = vmatpush.bf16.msra.mxu0 %v299
      %315 = vmatpush.bf16.msra.mxu0 %v298
      %316 = vmatpush.bf16.msra.mxu0 %v297
      %317 = vmatpush.bf16.msra.mxu0 %v296
      %318 = vmatpush.bf16.msra.mxu0 %v295
      %319 = vmatmul.bf16.gmra.mxu0 %v261
      %v320 = vpop.f32.mrf.mxu0
      %v321 = vadd.f32 0.0, %v320
      %v322 = vpop.f32.mrf.mxu0
      %v323 = vadd.f32 0.0, %v322
      %324 = vdwg.mxu0
      %v325 = vld [vmem:[%s217 + $0x4] sm:$0xf]
      %v326 = vld [vmem:[%s217 + $0xc] sm:$0xf]
      %v329 = vunpack.c.l.b16 %v325
      %v330 = vunpack.c.l.b16 %v326
      %v331 = vpack.c.b16 %v330, %v329
      %333 = vmatpush.bf16.msra.mxu0 %v302
      %334 = vmatpush.bf16.msra.mxu0 %v301
      %335 = vmatpush.bf16.msra.mxu0 %v300
      %336 = vmatpush.bf16.msra.mxu0 %v299
      %337 = vmatpush.bf16.msra.mxu0 %v298
      %338 = vmatpush.bf16.msra.mxu0 %v297
      %339 = vmatpush.bf16.msra.mxu0 %v296
      %340 = vmatpush.bf16.msra.mxu0 %v295
      %341 = vmatmul.bf16.gmra.mxu0 %v331
      %v342 = vpop.f32.mrf.mxu0
      %v343 = vadd.f32 0.0, %v342
      %v344 = vpop.f32.mrf.mxu0
      %v345 = vadd.f32 0.0, %v344
      %346 = vdwg.mxu0
      %v347 = vpack.c.bf16 %v343, %v321
      %v348 = vpack.c.bf16 %v345, %v323
      %349 = vst [vmem:[%s237] sm:$0xff] %v347
      %350 = vst [vmem:[%s237 + $0x8] sm:$0xff] %v348
      %s351 = smul.u32 2, %s20
      %p352 = scmp.lt.s32.totalorder %s18, 1
      %s353 = scalar_select %p352, %s18, 1
      %p354 = scmp.lt.s32.totalorder %s19, 1
      %s355 = scalar_select %p354, %s19, 1
      %p356 = scmp.lt.s32.totalorder %s351, 1
      %s357 = scalar_select %p356, %s351, 1
      %s358 = smul.addr %s357, 2
      %s359 = smul.addr %s355, 4
      %s360 = sadd.s32 %s358, %s359
      %s361 = smul.addr %s353, 8
      %s362 = sadd.s32 %s360, %s361
      %s363 = smul.addr %s362, 4
      %s364 = scalar_lea.vmem %s2, %s363
      // Predicated region
      $region29: #{model_forward.6} parent=27 // pred_check
        %p365 = pneg %p110
      $region30: #{model_forward.6} parent=27 // pred_check_branch
        %367 = sbr.rel (%p365) target = $region32
      $region31: #{model_forward.6} parent=27 // pred_region
        %s368 = smul.u32 2, %s20
      $region32: #{model_forward.6} parent=27 // pred_fallthru
        _
    $region28: #{model_forward.6} parent=5 // pred_fallthru
      _
    %p369 = scmp.le.s32.totalorder 2, %s8
    // Predicated region
    $region33: #{model_forward.6} parent=5 // pred_check
      %p370 = pneg %p369
    $region34: #{model_forward.6} parent=5 // pred_check_branch
      %372 = sbr.rel (%p370) target = $region36
    $region35: #{model_forward.6} parent=5 // pred_region
      %s373 = ssub.s32 %s8, 2
      // Predicated region
      $region37: #{model_forward.6} parent=35 // pred_check
        %p374 = pneg %p116
      $region38: #{model_forward.6} parent=35 // pred_check_branch
        %376 = sbr.rel (%p374) target = $region40
      $region39: #{model_forward.6} parent=35 // pred_region
        %s377 = smul.u32 2, %s23
        %p378 = scmp.lt.s32.totalorder %s21, 1
        %s379 = scalar_select %p378, %s21, 1
        %p380 = scmp.lt.s32.totalorder %s22, 1
        %s381 = scalar_select %p380, %s22, 1
        %p382 = scmp.lt.s32.totalorder %s377, 1
        %s383 = scalar_select %p382, %s377, 1
        %s384 = smul.addr %s383, 2
        %s385 = smul.addr %s381, 4
        %s386 = sadd.s32 %s384, %s385
        %s387 = smul.addr %s379, 8
        %s388 = sadd.s32 %s386, %s387
        %s389 = smul.addr %s388, 4
        %s390 = scalar_lea.vmem %s2, %s389
      $region40: #{model_forward.6} parent=35 // pred_fallthru
        _
    $region36: #{model_forward.6} parent=5 // pred_fallthru
      _
  $region6: #{model_forward.6} parent=0 // loop_footer
    %s12 = sadd.s32 1, %s8
  $region7: #{model_forward.6} parent=0 // loop_footer_branch
    %7 = sbr.rel target = $region3
  $region8: #{model_forward.6} parent=0 // loop_exit
    _

// kernel: model_forward.7
$region0: #{model_forward.7}
  #allocation0 [shape = 'u32[]', space=smem, size = 0x4, offset = 0x4, fixed_abs, tag = 'smem constant byte address 0x4 - core index']
  #allocation1 [shape = 'u32[72,128]{1,0:T(1,128)}', space=vmem, size = 0x9000, scoped, tag = 'internal scratch']
  #allocation2 [shape = 'f32[16,256]{1,0:T(8,128)}', space=vmem, size = 0x4000, scoped, tag = 'scratch operand']
  %s0 = inlined_call_operand.vmem [shape: bf16[2,2,16,16], index: 0, kind: input, shape index: {}]
  %s1 = inlined_call_operand.vmem [shape: bf16[2,2,16,256], index: 1, kind: input, shape index: {}]
  %s2 = inlined_call_operand.vmem [shape: f32[2,2,256], index: 2, kind: input, shape index: {}]
  %s3 = inlined_call_operand.vmem [shape: f32[2,2,16,256], index: 3, kind: output, shape index: {}]
  %s4 = sld [smem:[#allocation0]]
  $region53: #{model_forward.7} parent=0
    _
  %s6 = ssub.s32 1, %s4
  %s7 = scalar_select 0, %s6, %s4
  loop: start=0, step=1, limit=6
  $region2: #{model_forward.7} parent=0 // loop_pre_header
    _
  $region3: #{model_forward.7} parent=0 // loop_header
    %s9 = sphi 0, %s13
    %p10 = scmp.ge.s32.totalorder %s9, 6
    %s16 = sphi 0, %s42
    %s17 = sphi 0, %s38
    %s18 = sphi 0, %s34
    %s19 = sphi 0, %s30
    %s20 = sphi 0, %s16
    %s21 = sphi 0, %s17
    %s22 = sphi 0, %s18
    %s23 = sphi 0, %s19
    %s24 = sphi 0, %s20
    %s25 = sphi 0, %s21
    %s26 = sphi 0, %s22
    %s27 = sphi 0, %s23
    %s51 = sphi 0, %s53
    %s54 = sphi 0, %s51
    %s55 = sphi 0, %s54
    %s71 = sphi 0, %s55
    %s81 = sphi 0, %s83
    %s84 = sphi 0, %s81
    %s85 = sphi 0, %s84
    %s101 = sphi 0, %s85
    %s107 = sphi 0, %s109
    %s110 = sphi 0, %s107
    %s111 = sphi 0, %s110
    %s127 = sphi 0, %s111
    %s137 = sphi 0, %s139
    %s140 = sphi 0, %s137
    %s141 = sphi 0, %s140
    %s157 = sphi 0, %s141
  $region4: #{model_forward.7} parent=0 // loop_header_branch
    %12 = sbr.rel (%p10) target = $region8
  $region5: #{model_forward.7} parent=0 // loop_body
    %s14 = ssub.s32 %s9, 1
    %s15 = ssub.s32 %s9, 2
    %s28 = sadd.s32 1, %s19
    %p29 = scmp.ge.s32.totalorder %s28, 1
    %s30 = scalar_select %p29, 0, %s28
    %s31 = sadd.s32 1, %s18
    %s32 = scalar_select %p29, %s31, %s18
    %p33 = scmp.ge.s32.totalorder %s32, 1
    %s34 = scalar_select %p33, 0, %s32
    %s35 = sadd.s32 1, %s17
    %s36 = scalar_select %p33, %s35, %s17
    %p37 = scmp.ge.s32.totalorder %s36, 2
    %s38 = scalar_select %p37, 0, %s36
    %s39 = sadd.s32 1, %s16
    %s40 = scalar_select %p37, %s39, %s16
    %p41 = scmp.ge.s32.totalorder %s40, 2
    %s42 = scalar_select %p41, 0, %s40
    %s43 = ssub.s32 %s16, %s42
    %s44 = ssub.s32 %s17, %s38
    %s45 = sor.u32 %s43, %s44
    %s46 = ssub.s32 %s18, %s34
    %s47 = sor.u32 %s45, %s46
    %s48 = ssub.s32 %s19, %s30
    %s49 = sor.u32 %s47, %s48
    %p50 = scmp.eq.s32.totalorder %s49, 0
    %s52 = sadd.s32 %s51, 1
    %s53 = scalar_select %p50, %s51, %s52
    %p56 = pneg %p50
    %p57 = scmp.eq.s32.totalorder %s9, 3
    %p58 = por %p56, %p57
    %p59 = scmp.ne.s32.totalorder %s51, %s54
    %p60 = scmp.eq.s32.totalorder %s9, 0
    %p61 = por %p59, %p60
    %p62 = scmp.ne.s32.totalorder %s51, %s54
    %p63 = scmp.eq.s32.totalorder %s14, 3
    %p64 = por %p62, %p63
    %p65 = scmp.ne.s32.totalorder %s54, %s55
    %p66 = scmp.eq.s32.totalorder %s14, 0
    %p67 = por %p65, %p66
    %p68 = scmp.ne.s32.totalorder %s54, %s55
    %p69 = scmp.eq.s32.totalorder %s15, 3
    %p70 = por %p68, %p69
    %p72 = scmp.ne.s32.totalorder %s55, %s71
    %p73 = scmp.eq.s32.totalorder %s15, 0
    %p74 = por %p72, %p73
    %s75 = ssub.s32 %s16, %s42
    %s76 = ssub.s32 %s17, %s38
    %s77 = sor.u32 %s75, %s76
    %s78 = ssub.s32 %s19, %s30
    %s79 = sor.u32 %s77, %s78
    %p80 = scmp.eq.s32.totalorder %s79, 0
    %s82 = sadd.s32 %s81, 1
    %s83 = scalar_select %p80, %s81, %s82
    %p86 = pneg %p80
    %p87 = scmp.eq.s32.totalorder %s9, 3
    %p88 = por %p86, %p87
    %p89 = scmp.ne.s32.totalorder %s81, %s84
    %p90 = scmp.eq.s32.totalorder %s9, 0
    %p91 = por %p89, %p90
    %p92 = scmp.ne.s32.totalorder %s81, %s84
    %p93 = scmp.eq.s32.totalorder %s14, 3
    %p94 = por %p92, %p93
    %p95 = scmp.ne.s32.totalorder %s84, %s85
    %p96 = scmp.eq.s32.totalorder %s14, 0
    %p97 = por %p95, %p96
    %p98 = scmp.ne.s32.totalorder %s84, %s85
    %p99 = scmp.eq.s32.totalorder %s15, 3
    %p100 = por %p98, %p99
    %p102 = scmp.ne.s32.totalorder %s85, %s101
    %p103 = scmp.eq.s32.totalorder %s15, 0
    %p104 = por %p102, %p103
    %s105 = ssub.s32 %s16, %s42
    %p106 = scmp.eq.s32.totalorder %s105, 0
    %s108 = sadd.s32 %s107, 1
    %s109 = scalar_select %p106, %s107, %s108
    %p112 = pneg %p106
    %p113 = scmp.eq.s32.totalorder %s9, 3
    %p114 = por %p112, %p113
    %p115 = scmp.ne.s32.totalorder %s107, %s110
    %p116 = scmp.eq.s32.totalorder %s9, 0
    %p117 = por %p115, %p116
    %p118 = scmp.ne.s32.totalorder %s107, %s110
    %p119 = scmp.eq.s32.totalorder %s14, 3
    %p120 = por %p118, %p119
    %p121 = scmp.ne.s32.totalorder %s110, %s111
    %p122 = scmp.eq.s32.totalorder %s14, 0
    %p123 = por %p121, %p122
    %p124 = scmp.ne.s32.totalorder %s110, %s111
    %p125 = scmp.eq.s32.totalorder %s15, 3
    %p126 = por %p124, %p125
    %p128 = scmp.ne.s32.totalorder %s111, %s127
    %p129 = scmp.eq.s32.totalorder %s15, 0
    %p130 = por %p128, %p129
    %s131 = ssub.s32 %s16, %s42
    %s132 = ssub.s32 %s17, %s38
    %s133 = sor.u32 %s131, %s132
    %s134 = ssub.s32 %s18, %s34
    %s135 = sor.u32 %s133, %s134
    %p136 = scmp.eq.s32.totalorder %s135, 0
    %s138 = sadd.s32 %s137, 1
    %s139 = scalar_select %p136, %s137, %s138
    %p142 = pneg %p136
    %p143 = scmp.eq.s32.totalorder %s9, 3
    %p144 = por %p142, %p143
    %p145 = scmp.ne.s32.totalorder %s137, %s140
    %p146 = scmp.eq.s32.totalorder %s9, 0
    %p147 = por %p145, %p146
    %p148 = scmp.ne.s32.totalorder %s137, %s140
    %p149 = scmp.eq.s32.totalorder %s14, 3
    %p150 = por %p148, %p149
    %p151 = scmp.ne.s32.totalorder %s140, %s141
    %p152 = scmp.eq.s32.totalorder %s14, 0
    %p153 = por %p151, %p152
    %p154 = scmp.ne.s32.totalorder %s140, %s141
    %p155 = scmp.eq.s32.totalorder %s15, 3
    %p156 = por %p154, %p155
    %p158 = scmp.ne.s32.totalorder %s141, %s157
    %p159 = scmp.eq.s32.totalorder %s15, 0
    %p160 = por %p158, %p159
    %p161 = scmp.le.s32.totalorder 1, %s9
    %p162 = scmp.lt.s32.totalorder %s9, 5
    %p163 = pnand %p161, %p162
    %p164 = pneg %p163
    // Predicated region
    $region9: #{model_forward.7} parent=5 // pred_check
      _
    $region10: #{model_forward.7} parent=5 // pred_check_branch
      %166 = sbr.rel (%p163) target = $region12
    $region11: #{model_forward.7} parent=5 // pred_region
      %s167 = ssub.s32 %s9, 1
    $region12: #{model_forward.7} parent=5 // pred_fallthru
      _
    %p168 = scmp.lt.s32.totalorder %s9, 4
    // Predicated region
    $region13: #{model_forward.7} parent=5 // pred_check
      %p169 = pneg %p168
    $region14: #{model_forward.7} parent=5 // pred_check_branch
      %171 = sbr.rel (%p169) target = $region16
    $region15: #{model_forward.7} parent=5 // pred_region
      // Predicated region
      $region17: #{model_forward.7} parent=15 // pred_check
        %p172 = pneg %p61
      $region18: #{model_forward.7} parent=15 // pred_check_branch
        %174 = sbr.rel (%p172) target = $region20
      $region19: #{model_forward.7} parent=15 // pred_region
        %s175 = smul.u32 2, %s18
        %p176 = scmp.lt.s32.totalorder %s16, 1
        %s177 = scalar_select %p176, %s16, 1
        %p178 = scmp.lt.s32.totalorder %s17, 1
        %s179 = scalar_select %p178, %s17, 1
        %p180 = scmp.lt.s32.totalorder %s175, 1
        %s181 = scalar_select %p180, %s175, 1
        %p182 = scmp.lt.s32.totalorder %s19, 0
        %s183 = scalar_select %p182, %s19, 0
        %s184 = sadd.s32 %s183, %s181
        %s185 = smul.addr %s179, 2
        %s186 = sadd.s32 %s184, %s185
        %s187 = smul.addr %s177, 4
        %s188 = sadd.s32 %s186, %s187
        %s189 = smul.addr %s188, 4
        %s190 = scalar_lea.vmem %s0, %s189
        %s191 = smul.u32 2, %s18
      $region20: #{model_forward.7} parent=15 // pred_fallthru
        _
      // Predicated region
      $region21: #{model_forward.7} parent=15 // pred_check
        %p192 = pneg %p91
      $region22: #{model_forward.7} parent=15 // pred_check_branch
        %194 = sbr.rel (%p192) target = $region24
      $region23: #{model_forward.7} parent=15 // pred_region
        %s195 = smul.u32 2, %s19
        %p196 = scmp.lt.s32.totalorder %s16, 1
        %s197 = scalar_select %p196, %s16, 1
        %p198 = scmp.lt.s32.totalorder %s17, 1
        %s199 = scalar_select %p198, %s17, 1
        %p200 = scmp.lt.s32.totalorder %s195, 1
        %s201 = scalar_select %p200, %s195, 1
        %s202 = smul.addr %s201, 2
        %s203 = smul.addr %s199, 4
        %s204 = sadd.s32 %s202, %s203
        %s205 = smul.addr %s197, 8
        %s206 = sadd.s32 %s204, %s205
        %s207 = smul.addr %s206, 4
        %s208 = scalar_lea.vmem %s1, %s207
        %s209 = smul.u32 2, %s19
      $region24: #{model_forward.7} parent=15 // pred_fallthru
        _
      // Predicated region
      $region25: #{model_forward.7} parent=15 // pred_check
        %p210 = pneg %p117
      $region26: #{model_forward.7} parent=15 // pred_check_branch
        %212 = sbr.rel (%p210) target = $region28
      $region27: #{model_forward.7} parent=15 // pred_region
        %p213 = scmp.lt.s32.totalorder %s16, 1
        %s214 = scalar_select %p213, %s16, 1
        %s215 = smul.addr %s214, 2
        %s216 = smul.addr %s215, 2
        %s217 = scalar_lea.vmem %s2, %s216
      $region28: #{model_forward.7} parent=15 // pred_fallthru
        _
    $region16: #{model_forward.7} parent=5 // pred_fallthru
      _
    %p218 = scmp.le.s32.totalorder 1, %s9
    %p219 = scmp.lt.s32.totalorder %s9, 5
    %p220 = pnand %p218, %p219
    %p221 = pneg %p220
    // Predicated region
    $region29: #{model_forward.7} parent=5 // pred_check
      _
    $region30: #{model_forward.7} parent=5 // pred_check_branch
      %223 = sbr.rel (%p220) target = $region32
    $region31: #{model_forward.7} parent=5 // pred_region
      %s224 = ssub.s32 %s9, 1
      %s225 = smul.u32 2, %s22
      %p226 = scmp.lt.s32.totalorder %s20, 1
      %s227 = scalar_select %p226, %s20, 1
      %p228 = scmp.lt.s32.totalorder %s21, 1
      %s229 = scalar_select %p228, %s21, 1
      %p230 = scmp.lt.s32.totalorder %s225, 1
      %s231 = scalar_select %p230, %s225, 1
      %p232 = scmp.lt.s32.totalorder %s23, 0
      %s233 = scalar_select %p232, %s23, 0
      %s234 = sadd.s32 %s233, %s231
      %s235 = smul.addr %s229, 2
      %s236 = sadd.s32 %s234, %s235
      %s237 = smul.addr %s227, 4
      %s238 = sadd.s32 %s236, %s237
      %s239 = smul.addr %s238, 4
      %s240 = scalar_lea.vmem %s0, %s239
      %p241 = pneg %p67
      %p242 = pneg %p64
      %s243 = smul.u32 2, %s23
      %p244 = scmp.lt.s32.totalorder %s20, 1
      %s245 = scalar_select %p244, %s20, 1
      %p246 = scmp.lt.s32.totalorder %s21, 1
      %s247 = scalar_select %p246, %s21, 1
      %p248 = scmp.lt.s32.totalorder %s243, 1
      %s249 = scalar_select %p248, %s243, 1
      %s250 = smul.addr %s249, 2
      %s251 = smul.addr %s247, 4
      %s252 = sadd.s32 %s250, %s251
      %s253 = smul.addr %s245, 8
      %s254 = sadd.s32 %s252, %s253
      %s255 = smul.addr %s254, 4
      %s256 = scalar_lea.vmem %s1, %s255
      %p257 = pneg %p97
      %p258 = pneg %p94
      %p259 = scmp.lt.s32.totalorder %s20, 1
      %s260 = scalar_select %p259, %s20, 1
      %s261 = smul.addr %s260, 2
      %s262 = smul.addr %s261, 2
      %s263 = scalar_lea.vmem %s2, %s262
      %p264 = pneg %p123
      %p265 = pneg %p120
      %p266 = pneg %p153
      %p267 = pneg %p150
      %s268 = smul.u32 2, %s22
      %p269 = scmp.lt.s32.totalorder %s20, 1
      %s270 = scalar_select %p269, %s20, 1
      %p271 = scmp.lt.s32.totalorder %s21, 1
      %s272 = scalar_select %p271, %s21, 1
      %p273 = scmp.lt.s32.totalorder %s268, 1
      %s274 = scalar_select %p273, %s268, 1
      %s275 = smul.addr %s274, 2
      %s276 = smul.addr %s272, 4
      %s277 = sadd.s32 %s275, %s276
      %s278 = smul.addr %s270, 8
      %s279 = sadd.s32 %s277, %s278
      %s280 = smul.addr %s279, 8
      %s281 = scalar_lea.vmem %s3, %s280
      %s282 = smul.u32 2, %s22
      %p283 = scmp.lt.s32.totalorder %s20, 1
      %s284 = scalar_select %p283, %s20, 1
      %p285 = scmp.lt.s32.totalorder %s21, 1
      %s286 = scalar_select %p285, %s21, 1
      %p287 = scmp.lt.s32.totalorder %s282, 1
      %s288 = scalar_select %p287, %s282, 1
      %p289 = scmp.lt.s32.totalorder %s23, 0
      %s290 = scalar_select %p289, %s23, 0
      %s291 = sadd.s32 %s290, %s288
      %s292 = smul.addr %s286, 2
      %s293 = sadd.s32 %s291, %s292
      %s294 = smul.addr %s284, 4
      %s295 = sadd.s32 %s293, %s294
      %s296 = smul.addr %s295, 4
      %s297 = scalar_lea.vmem %s0, %s296
      %s298 = smul.u32 2, %s22
      %s299 = smul.u32 2, %s23
      %p300 = scmp.lt.s32.totalorder %s20, 1
      %s301 = scalar_select %p300, %s20, 1
      %p302 = scmp.lt.s32.totalorder %s21, 1
      %s303 = scalar_select %p302, %s21, 1
      %p304 = scmp.lt.s32.totalorder %s299, 1
      %s305 = scalar_select %p304, %s299, 1
      %s306 = smul.addr %s305, 2
      %s307 = smul.addr %s303, 4
      %s308 = sadd.s32 %s306, %s307
      %s309 = smul.addr %s301, 8
      %s310 = sadd.s32 %s308, %s309
      %s311 = smul.addr %s310, 4
      %s312 = scalar_lea.vmem %s1, %s311
      %s313 = smul.u32 2, %s23
      %p314 = scmp.lt.s32.totalorder %s20, 1
      %s315 = scalar_select %p314, %s20, 1
      %s316 = smul.addr %s315, 2
      %s317 = smul.addr %s316, 2
      %s318 = scalar_lea.vmem %s2, %s317
      %s319 = smul.u32 2, %s22
      %p320 = scmp.lt.s32.totalorder %s20, 1
      %s321 = scalar_select %p320, %s20, 1
      %p322 = scmp.lt.s32.totalorder %s21, 1
      %s323 = scalar_select %p322, %s21, 1
      %p324 = scmp.lt.s32.totalorder %s319, 1
      %s325 = scalar_select %p324, %s319, 1
      %s326 = smul.addr %s325, 2
      %s327 = smul.addr %s323, 4
      %s328 = sadd.s32 %s326, %s327
      %s329 = smul.addr %s321, 8
      %s330 = sadd.s32 %s328, %s329
      %s331 = smul.addr %s330, 8
      %s332 = scalar_lea.vmem %s3, %s331
      %s333 = smul.u32 2, %s22
      %p335 = scmp.eq.s32.totalorder %s23, 0
      // Predicated region
      $region33: #{model_forward.7} parent=31 // pred_check
        %p336 = pneg %p335
      $region34: #{model_forward.7} parent=31 // pred_check_branch
        %338 = sbr.rel (%p336) target = $region36
      $region35: #{model_forward.7} parent=31 // pred_region
        %339 = vst [vmem:[#allocation2] sm:$0xff] 0.0
        %340 = vst [vmem:[#allocation2 + $0x8] sm:$0xff] 0.0
        %341 = vst [vmem:[#allocation2 + $0x10] sm:$0xff] 0.0
        %342 = vst [vmem:[#allocation2 + $0x18] sm:$0xff] 0.0
      $region36: #{model_forward.7} parent=31 // pred_fallthru
        _
      %v343 = vld [vmem:[#allocation2] sm:$0xff]
      %v344 = vld [vmem:[#allocation2 + $0x8] sm:$0xff]
      %v345 = vld [vmem:[#allocation2 + $0x10] sm:$0xff]
      %v346 = vld [vmem:[#allocation2 + $0x18] sm:$0xff]
      %v347 = vld [vmem:[%s297] sm:$0xf]
      %v348 = vld [vmem:[%s297 + $0x4] sm:$0xf]
      %v349 = vld [vmem:[%s312] sm:$0xff]
      %v350 = vld [vmem:[%s312 + $0x8] sm:$0xff]
      %v353 = vunpack.c.l.b16 %v347
      %v354 = vunpack.c.l.b16 %v348
      %v355 = vpack.c.b16 %v354, %v353
      %v358 = vunpack.c.l.b16 %v349
      %v359 = vunpack.c.h.b16 %v349
      %v360 = vunpack.c.l.b16 %v350
      %v361 = vunpack.c.h.b16 %v350
      %v362 = vpack.c.b16 %v360, %v358
      %v363 = vpack.c.b16 %v361, %v359
      %vm366 = vcmask 130048
      %v368 = vsel %vm366, %v355, 0
      %370 = vmatpush.bf16.msra.mxu0 0
      %371 = vmatpush.bf16.msra.mxu0 0
      %372 = vmatpush.bf16.msra.mxu0 0
      %373 = vmatpush.bf16.msra.mxu0 0
      %374 = vmatpush.bf16.msra.mxu0 0
      %375 = vmatpush.bf16.msra.mxu0 0
      %376 = vmatpush.bf16.msra.mxu0 0
      %377 = vmatpush.bf16.msra.mxu0 %v362
      %378 = vmatmul.bf16.gmra.mxu0 %v368
      %v379 = vpop.f32.mrf.mxu0
      %v380 = vadd.f32 0.0, %v379
      %v381 = vpop.f32.mrf.mxu0
      %v382 = vadd.f32 0.0, %v381
      %383 = vdwg.mxu0
      %384 = vmatpush.bf16.msra.mxu0 0
      %385 = vmatpush.bf16.msra.mxu0 0
      %386 = vmatpush.bf16.msra.mxu0 0
      %387 = vmatpush.bf16.msra.mxu0 0
      %388 = vmatpush.bf16.msra.mxu0 0
      %389 = vmatpush.bf16.msra.mxu0 0
      %390 = vmatpush.bf16.msra.mxu0 0
      %391 = vmatpush.bf16.msra.mxu0 %v363
      %392 = vmatmul.bf16.gmra.mxu0 %v368
      %v393 = vpop.f32.mrf.mxu0
      %v394 = vadd.f32 0.0, %v393
      %v395 = vpop.f32.mrf.mxu0
      %v396 = vadd.f32 0.0, %v395
      %397 = vdwg.mxu0
      %v398 = vadd.f32 %v343, %v380
      %v399 = vadd.f32 %v344, %v394
      %v400 = vadd.f32 %v345, %v382
      %v401 = vadd.f32 %v346, %v396
      %402 = vst [vmem:[#allocation2] sm:$0xff] %v398
      %403 = vst [vmem:[#allocation2 + $0x8] sm:$0xff] %v399
      %404 = vst [vmem:[#allocation2 + $0x10] sm:$0xff] %v400
      %405 = vst [vmem:[#allocation2 + $0x18] sm:$0xff] %v401
      // Predicated region
      $region37: #{model_forward.7} parent=31 // pred_check
        %p406 = pneg %p335
      $region38: #{model_forward.7} parent=31 // pred_check_branch
        %408 = sbr.rel (%p406) target = $region40
      $region39: #{model_forward.7} parent=31 // pred_region
        %v409 = vld [vmem:[%s318] sm:$0xf]
        %v410 = vld [vmem:[#allocation2] sm:$0xff]
        %v411 = vld [vmem:[#allocation2 + $0x8] sm:$0xff]
        %v412 = vld [vmem:[#allocation2 + $0x10] sm:$0xff]
        %v413 = vld [vmem:[#allocation2 + $0x18] sm:$0xff]
        %v415 = vperm.slane %v409, 0
        %v416 = vperm.slane %v409, 2
        %v419 = vperm.slane %v415, 0
        %v420 = vperm.slane %v416, 0
        %v421 = vadd.f32 %v410, %v419
        %v422 = vadd.f32 %v411, %v420
        %v423 = vadd.f32 %v412, %v419
        %v424 = vadd.f32 %v413, %v420
        %vm425 = vcmp.gt.f32.partialorder %v421, 0.0
        %vm426 = vcmp.gt.f32.partialorder %v422, 0.0
        %vm427 = vcmp.gt.f32.partialorder %v423, 0.0
        %vm428 = vcmp.gt.f32.partialorder %v424, 0.0
        %v429 = vperm.slane %v409, 1
        %v430 = vperm.slane %v409, 3
        %v433 = vperm.slane %v429, 1
        %v434 = vperm.slane %v430, 1
        %v435 = vmul.f32 %v433, %v421
        %v436 = vmul.f32 %v434, %v422
        %v437 = vmul.f32 %v433, %v423
        %v438 = vmul.f32 %v434, %v424
        %v439 = vsel %vm425, %v421, %v435
        %v440 = vsel %vm426, %v422, %v436
        %v441 = vsel %vm427, %v423, %v437
        %v442 = vsel %vm428, %v424, %v438
        %443 = vst [vmem:[%s332] sm:$0xff] %v439
        %444 = vst [vmem:[%s332 + $0x8] sm:$0xff] %v440
        %445 = vst [vmem:[%s332 + $0x10] sm:$0xff] %v441
        %446 = vst [vmem:[%s332 + $0x18] sm:$0xff] %v442
      $region40: #{model_forward.7} parent=31 // pred_fallthru
        _
      %s447 = smul.u32 2, %s22
      %p448 = scmp.lt.s32.totalorder %s20, 1
      %s449 = scalar_select %p448, %s20, 1
      %p450 = scmp.lt.s32.totalorder %s21, 1
      %s451 = scalar_select %p450, %s21, 1
      %p452 = scmp.lt.s32.totalorder %s447, 1
      %s453 = scalar_select %p452, %s447, 1
      %s454 = smul.addr %s453, 2
      %s455 = smul.addr %s451, 4
      %s456 = sadd.s32 %s454, %s455
      %s457 = smul.addr %s449, 8
      %s458 = sadd.s32 %s456, %s457
      %s459 = smul.addr %s458, 8
      %s460 = scalar_lea.vmem %s3, %s459
      // Predicated region
      $region41: #{model_forward.7} parent=31 // pred_check
        %p461 = pneg %p150
      $region42: #{model_forward.7} parent=31 // pred_check_branch
        %463 = sbr.rel (%p461) target = $region44
      $region43: #{model_forward.7} parent=31 // pred_region
        %s464 = smul.u32 2, %s22
      $region44: #{model_forward.7} parent=31 // pred_fallthru
        _
    $region32: #{model_forward.7} parent=5 // pred_fallthru
      _
    %p465 = scmp.le.s32.totalorder 2, %s9
    // Predicated region
    $region45: #{model_forward.7} parent=5 // pred_check
      %p466 = pneg %p465
    $region46: #{model_forward.7} parent=5 // pred_check_branch
      %468 = sbr.rel (%p466) target = $region48
    $region47: #{model_forward.7} parent=5 // pred_region
      %s469 = ssub.s32 %s9, 2
      // Predicated region
      $region49: #{model_forward.7} parent=47 // pred_check
        %p470 = pneg %p156
      $region50: #{model_forward.7} parent=47 // pred_check_branch
        %472 = sbr.rel (%p470) target = $region52
      $region51: #{model_forward.7} parent=47 // pred_region
        %s473 = smul.u32 2, %s26
        %p474 = scmp.lt.s32.totalorder %s24, 1
        %s475 = scalar_select %p474, %s24, 1
        %p476 = scmp.lt.s32.totalorder %s25, 1
        %s477 = scalar_select %p476, %s25, 1
        %p478 = scmp.lt.s32.totalorder %s473, 1
        %s479 = scalar_select %p478, %s473, 1
        %s480 = smul.addr %s479, 2
        %s481 = smul.addr %s477, 4
        %s482 = sadd.s32 %s480, %s481
        %s483 = smul.addr %s475, 8
        %s484 = sadd.s32 %s482, %s483
        %s485 = smul.addr %s484, 8
        %s486 = scalar_lea.vmem %s3, %s485
      $region52: #{model_forward.7} parent=47 // pred_fallthru
        _
    $region48: #{model_forward.7} parent=5 // pred_fallthru
      _
  $region6: #{model_forward.7} parent=0 // loop_footer
    %s13 = sadd.s32 1, %s9
  $region7: #{model_forward.7} parent=0 // loop_footer_branch
    %8 = sbr.rel target = $region3
  $region8: #{model_forward.7} parent=0 // loop_exit
    _

</llo_original>
